<compile_context>
chip_gen: v5e
topology: v5e:2x2
jax: 0.10.0
libtpu: 0.0.40
codegen_flags: <defaults>
</compile_context>

<pallas_src>
import jax
import jax.numpy as jnp
from jax.experimental import pallas as pl
from jax.experimental.pallas import tpu as pltpu


def _round_up(v, m):
    return ((v + m - 1) // m) * m


def _vmem_budget_and_limit():
    """(tile budget, scoped-VMEM limit) in bytes, per TPU generation.

    Conservative defaults sized for v7x (64 MiB physical / 32 MiB default
    scoped); the 128-MiB-VMEM parts (v5e / v6e) get a larger budget + limit.
    """
    budget, limit = 12 * 1024 * 1024, 32 * 1024 * 1024
    try:
        if pltpu.get_tpu_info().vmem_capacity_bytes >= 100 * 1024 * 1024:
            budget, limit = 20 * 1024 * 1024, 64 * 1024 * 1024
    except Exception:
        pass  # unknown chip / interpret mode: keep the conservative setting
    return budget, limit


# --------------------------------------------------------------------------
# Kernel A: already-permuted (T, B, N) layout, MXU gram (general path).
# --------------------------------------------------------------------------
def _sa_kernel_tbn(z_ref, o_ref):
    z = z_ref[...].astype(jnp.float32)                        # (TT, B, N)

    # F.normalize(z, dim=-1): v / max(||v||, 1e-12) == v * rsqrt(max(||v||^2, 1e-24))
    sumsq = jnp.sum(z * z, axis=-1, keepdims=True)            # (TT, B, 1)
    z1 = z * jax.lax.rsqrt(jnp.maximum(sumsq, 1e-24))

    # Cosine-similarity gram on the MXU: contraction over the last dim of both
    # operands (no transposed copy).  bf16 operands + f32 accumulation cut the
    # f32-emulation matmul passes several-fold; |score| <= 1 keeps it benign.
    # TODO(synk): if a bundle dump shows the vector-extended slot saturating
    # (each t is a tiny (B,N)x(N,B) matmul that reloads MXU weights), pack
    # ~32 time steps' RHS across the 256-wide MXU per weight load.
    zb = z1.astype(jnp.bfloat16)
    score = jnp.einsum("tbn,tcn->tbc", zb, zb,
                       preferred_element_type=jnp.float32)    # (TT, B, B)

    # Numerically stable row softmax; divide via the EUP.
    m = jnp.max(score, axis=-1, keepdims=True)
    e = jnp.exp(score - m)
    denom = jnp.sum(e, axis=-1, keepdims=True)
    o_ref[...] = (e * pl.reciprocal(denom, approx=True)).astype(o_ref.dtype)


def _choose_tt_tbn(T, B, N, budget):
    """Time steps per grid step for the (T, B, N)-layout kernel."""
    in_t = 4 * _round_up(B, 8) * _round_up(N, 128)    # one padded f32 z row
    out_t = 4 * _round_up(B, 8) * _round_up(B, 128)   # one padded score row
    per_t = (2 * in_t              # double-buffered input block
             + 2 * out_t           # double-buffered output block
             + 2 * in_t + in_t // 2  # z, z1 (f32) + bf16 copy
             + 3 * out_t)          # score, e, normalized result
    cap = max(1, min(T, budget // per_t))
    g = pl.cdiv(T, cap)
    if T >= 2:
        g = max(g, 2)              # >= 2 steps: pipelining + megacore
    if g % 2 and g < T:
        g += 1                     # even grid: balanced v7x TensorCores
    return pl.cdiv(T, g)


@jax.jit
def spatial_attention_from_tbn(z):
    """(T, B, N) already-permuted input -> (T, B, B) attention scores.

    Preferred entry point when the producer can emit (T, B, N): it avoids any
    relayout pass at all.
    """
    T, B, N = z.shape
    budget, limit = _vmem_budget_and_limit()
    tt = _choose_tt_tbn(T, B, N, budget)
    return pl.pallas_call(
        _sa_kernel_tbn,
        out_shape=jax.ShapeDtypeStruct((T, B, B), jnp.float32),
        grid=(pl.cdiv(T, tt),),
        in_specs=[pl.BlockSpec((tt, B, N), lambda g: (g, 0, 0))],
        out_specs=pl.BlockSpec((tt, B, B), lambda g: (g, 0, 0)),
        compiler_params=pltpu.CompilerParams(
            dimension_semantics=("parallel",),
            vmem_limit_bytes=limit),
    )(z)


# --------------------------------------------------------------------------
# Kernel B: fused permute — reads the original (B, N, T) layout directly.
# Small-B path (B <= 8): VPU gram via broadcast-multiply + sublane reduces.
# --------------------------------------------------------------------------
def _sa_kernel_bnt(x_ref, o_ref):
    x = x_ref[...].astype(jnp.float32)                        # (B, N, TT)
    B = x.shape[0]

    # Normalize each (b, :, t) column over N (the sublane axis).
    sumsq = jnp.sum(x * x, axis=1, keepdims=True)             # (B, 1, TT)
    z1 = x * jax.lax.rsqrt(jnp.maximum(sumsq, 1e-24))         # (B, N, TT)

    # score[t, b, c] = sum_n z1[b, n, t] * z1[c, n, t]; computed row-by-row
    # (B <= 8 -> static unroll) entirely with sublane reduces: no in-kernel
    # transpose and no per-t tiny MXU matmul.
    for b in range(B):
        prod = z1 * z1[b:b + 1]                               # (B, N, TT)
        score_b = jnp.sum(prod, axis=1)                       # (B, TT) = score[t, b, :]
        m = jnp.max(score_b, axis=0, keepdims=True)           # (1, TT)
        e = jnp.exp(score_b - m)
        denom = jnp.sum(e, axis=0, keepdims=True)
        o_ref[b] = (e * pl.reciprocal(denom, approx=True)).astype(o_ref.dtype)


def _choose_tt_bnt(T, B, N, budget):
    """TT for the fused (B, N, T)-layout kernel, or None if it cannot fit.

    The block's last (lane) dim must be a multiple of 128 or equal T.  The
    budget counts the in-kernel temporaries: z1 plus (worst case) B live
    (B, N, TT) products from the unrolled per-row loop.
    """
    n8 = _round_up(N, 8)
    per_t = (2 * 4 * B * n8                  # double-buffered input block
             + 4 * B * n8                    # z1
             + 4 * B * B * n8                # per-row products (all live)
             + 2 * 4 * B * _round_up(B, 8)   # double-buffered output block
             + 4 * 4 * _round_up(B, 8))      # score_b / e / m / denom
    if T <= 128:
        return T if per_t * T <= budget else None
    cap = budget // per_t
    if cap < 128:
        return None
    tt = (min(cap, T) // 128) * 128
    # Keep >= 2 grid steps so both v7x TensorCores get work.
    tt = min(tt, max(128, ((T - 1) // 128) * 128))
    return tt


def _spatial_attention_fused_bnt(x, tt, limit):
    B, N, T = x.shape
    out_bbt = pl.pallas_call(
        _sa_kernel_bnt,
        out_shape=jax.ShapeDtypeStruct((B, B, T), jnp.float32),
        grid=(pl.cdiv(T, tt),),
        in_specs=[pl.BlockSpec((B, N, tt), lambda g: (0, 0, g))],
        out_specs=pl.BlockSpec((B, B, tt), lambda g: (0, 0, g)),
        compiler_params=pltpu.CompilerParams(
            dimension_semantics=("parallel",),
            vmem_limit_bytes=limit),
    )(x)
    # Small relayout only: the (B, B, T) output stream is ~(B/N)x the input
    # stream, so this XLA transpose is far cheaper than permuting the input.
    return jnp.transpose(out_bbt, (2, 0, 1))


@jax.jit
def spatial_attention_layer(x):
    """Torch-compatible entry: x (B, N, T) -> (T, B, B), matching forward()."""
    B, N, T = x.shape
    budget, limit = _vmem_budget_and_limit()
    if B <= 8:
        tt = _choose_tt_bnt(T, B, N, budget)
        if tt is not None:
            return _spatial_attention_fused_bnt(x, tt, limit)
    # Large-B / large-N fallback: one XLA relayout pass, then the MXU kernel.
    return spatial_attention_from_tbn(jnp.transpose(x, (2, 0, 1)))


def _reference(x):
    z = jnp.transpose(x, (2, 0, 1)).astype(jnp.float32)
    norm = jnp.sqrt(jnp.sum(z * z, axis=-1, keepdims=True))
    z1 = z / jnp.maximum(norm, 1e-12)
    score = jnp.einsum("tbn,tcn->tbc", z1, z1)
    return jax.nn.softmax(score, axis=-1)


if __name__ == "__main__":
    key = jax.random.PRNGKey(0)
    B, N, T = 8, 128, 256
    x = jax.random.normal(key, (B, N, T), dtype=jnp.float32)
    ref = _reference(x)

    # Torch-compatible path (fused (B, N, T)-layout kernel, no input permute).
    out = jax.block_until_ready(spatial_attention_layer(x))
    assert out.shape == (T, B, B)
    assert jnp.allclose(out, ref, atol=5e-3, rtol=5e-3), "fused path mismatch"

    # Already-permuted path (bf16-MXU kernel).
    out2 = jax.block_until_ready(
        spatial_attention_from_tbn(jnp.transpose(x, (2, 0, 1))))
    assert out2.shape == (T, B, B)
    assert jnp.allclose(out2, ref, atol=5e-3, rtol=5e-3), "tbn path mismatch"

    # Ragged T (not a multiple of the 128-wide fused block): exercises the
    # cdiv grid and the masked final block on real hardware.
    T2 = 200
    x2 = jax.random.normal(jax.random.PRNGKey(1), (B, N, T2), dtype=jnp.float32)
    out3 = jax.block_until_ready(spatial_attention_layer(x2))
    assert out3.shape == (T2, B, B)
    assert jnp.allclose(out3, _reference(x2), atol=5e-3, rtol=5e-3), "ragged mismatch"

    print("KERNEL_OK")
</pallas_src>

<mosaic_0001>
module attributes {stable_mosaic.version = 11 : i64} {
  func.func @_sa_kernel_bnt(%arg0: i32, %arg1: memref<8x128x128xf32, #tpu.memory_space<vmem>>, %arg2: memref<8x8x128xf32, #tpu.memory_space<vmem>>) attributes {dimension_semantics = [#tpu.dimension_semantics<parallel>], iteration_bounds = array<i64: 2>, scalar_prefetch = 0 : i64, scratch_operands = 0 : i64, tpu.core_type = #tpu.core_type<tc>, window_params = [{transform_indices = @transform_0, window_bounds = array<i64: 8, 128, 128>}, {transform_indices = @transform_1, window_bounds = array<i64: 8, 8, 128>}]} {
    %c0 = arith.constant 0 : index
    %c0_0 = arith.constant 0 : index
    %c0_1 = arith.constant 0 : index
    %0 = vector.load %arg1[%c0, %c0_0, %c0_1] : memref<8x128x128xf32, #tpu.memory_space<vmem>>, vector<8x128x128xf32>
    %1 = arith.mulf %0, %0 : vector<8x128x128xf32>
    %cst = arith.constant dense<0.000000e+00> : vector<8x128xf32>
    %2 = vector.multi_reduction <add>, %1, %cst [1] : vector<8x128x128xf32> to vector<8x128xf32>
    %3 = vector.shape_cast %2 : vector<8x128xf32> to vector<8x1x128xf32>
    %cst_2 = arith.constant 1.000000e-24 : f32
    %4 = vector.broadcast %cst_2 : f32 to vector<8x1x128xf32>
    %5 = arith.maximumf %3, %4 : vector<8x1x128xf32>
    %6 = math.rsqrt %5 : vector<8x1x128xf32>
    %7 = vector.broadcast %6 : vector<8x1x128xf32> to vector<8x128x128xf32>
    %8 = arith.mulf %0, %7 : vector<8x128x128xf32>
    %9 = vector.extract_strided_slice %8 {offsets = [0, 0, 0], sizes = [1, 128, 128], strides = [1, 1, 1]} : vector<8x128x128xf32> to vector<1x128x128xf32>
    %10 = vector.broadcast %9 : vector<1x128x128xf32> to vector<8x128x128xf32>
    %11 = arith.mulf %8, %10 : vector<8x128x128xf32>
    %cst_3 = arith.constant dense<0.000000e+00> : vector<8x128xf32>
    %12 = vector.multi_reduction <add>, %11, %cst_3 [1] : vector<8x128x128xf32> to vector<8x128xf32>
    %cst_4 = arith.constant dense<0xFF800000> : vector<128xf32>
    %13 = vector.multi_reduction <maximumf>, %12, %cst_4 [0] : vector<8x128xf32> to vector<128xf32>
    %14 = vector.shape_cast %13 : vector<128xf32> to vector<1x128xf32>
    %15 = vector.broadcast %14 : vector<1x128xf32> to vector<8x128xf32>
    %16 = arith.subf %12, %15 : vector<8x128xf32>
    %17 = math.exp %16 : vector<8x128xf32>
    %cst_5 = arith.constant dense<0.000000e+00> : vector<128xf32>
    %18 = vector.multi_reduction <add>, %17, %cst_5 [0] : vector<8x128xf32> to vector<128xf32>
    %19 = vector.shape_cast %18 : vector<128xf32> to vector<1x128xf32>
    %20 = tpu.reciprocal %19 {approx = true} : vector<1x128xf32> -> vector<1x128xf32>
    %21 = vector.broadcast %20 : vector<1x128xf32> to vector<8x128xf32>
    %22 = arith.mulf %17, %21 : vector<8x128xf32>
    %c0_6 = arith.constant 0 : index
    %c0_7 = arith.constant 0 : index
    %c0_8 = arith.constant 0 : index
    %23 = vector.load %arg2[%c0_6, %c0_7, %c0_8] : memref<8x8x128xf32, #tpu.memory_space<vmem>>, vector<1x8x128xf32>
    %24 = vector.shape_cast %23 : vector<1x8x128xf32> to vector<8x128xf32>
    %25 = vector.shape_cast %22 : vector<8x128xf32> to vector<1x8x128xf32>
    tpu.vector_store %arg2[%c0_6, %c0_7, %c0_8], %25 {strides = array<i32>} : memref<8x8x128xf32, #tpu.memory_space<vmem>>, vector<1x8x128xf32>,
    %26 = vector.extract_strided_slice %8 {offsets = [1, 0, 0], sizes = [1, 128, 128], strides = [1, 1, 1]} : vector<8x128x128xf32> to vector<1x128x128xf32>
    %27 = vector.broadcast %26 : vector<1x128x128xf32> to vector<8x128x128xf32>
    %28 = arith.mulf %8, %27 : vector<8x128x128xf32>
    %cst_9 = arith.constant dense<0.000000e+00> : vector<8x128xf32>
    %29 = vector.multi_reduction <add>, %28, %cst_9 [1] : vector<8x128x128xf32> to vector<8x128xf32>
    %cst_10 = arith.constant dense<0xFF800000> : vector<128xf32>
    %30 = vector.multi_reduction <maximumf>, %29, %cst_10 [0] : vector<8x128xf32> to vector<128xf32>
    %31 = vector.shape_cast %30 : vector<128xf32> to vector<1x128xf32>
    %32 = vector.broadcast %31 : vector<1x128xf32> to vector<8x128xf32>
    %33 = arith.subf %29, %32 : vector<8x128xf32>
    %34 = math.exp %33 : vector<8x128xf32>
    %cst_11 = arith.constant dense<0.000000e+00> : vector<128xf32>
    %35 = vector.multi_reduction <add>, %34, %cst_11 [0] : vector<8x128xf32> to vector<128xf32>
    %36 = vector.shape_cast %35 : vector<128xf32> to vector<1x128xf32>
    %37 = tpu.reciprocal %36 {approx = true} : vector<1x128xf32> -> vector<1x128xf32>
    %38 = vector.broadcast %37 : vector<1x128xf32> to vector<8x128xf32>
    %39 = arith.mulf %34, %38 : vector<8x128xf32>
    %c1 = arith.constant 1 : index
    %c0_12 = arith.constant 0 : index
    %c0_13 = arith.constant 0 : index
    %40 = vector.load %arg2[%c1, %c0_12, %c0_13] : memref<8x8x128xf32, #tpu.memory_space<vmem>>, vector<1x8x128xf32>
    %41 = vector.shape_cast %40 : vector<1x8x128xf32> to vector<8x128xf32>
    %42 = vector.shape_cast %39 : vector<8x128xf32> to vector<1x8x128xf32>
    tpu.vector_store %arg2[%c1, %c0_12, %c0_13], %42 {strides = array<i32>} : memref<8x8x128xf32, #tpu.memory_space<vmem>>, vector<1x8x128xf32>,
    %43 = vector.extract_strided_slice %8 {offsets = [2, 0, 0], sizes = [1, 128, 128], strides = [1, 1, 1]} : vector<8x128x128xf32> to vector<1x128x128xf32>
    %44 = vector.broadcast %43 : vector<1x128x128xf32> to vector<8x128x128xf32>
    %45 = arith.mulf %8, %44 : vector<8x128x128xf32>
    %cst_14 = arith.constant dense<0.000000e+00> : vector<8x128xf32>
    %46 = vector.multi_reduction <add>, %45, %cst_14 [1] : vector<8x128x128xf32> to vector<8x128xf32>
    %cst_15 = arith.constant dense<0xFF800000> : vector<128xf32>
    %47 = vector.multi_reduction <maximumf>, %46, %cst_15 [0] : vector<8x128xf32> to vector<128xf32>
    %48 = vector.shape_cast %47 : vector<128xf32> to vector<1x128xf32>
    %49 = vector.broadcast %48 : vector<1x128xf32> to vector<8x128xf32>
    %50 = arith.subf %46, %49 : vector<8x128xf32>
    %51 = math.exp %50 : vector<8x128xf32>
    %cst_16 = arith.constant dense<0.000000e+00> : vector<128xf32>
    %52 = vector.multi_reduction <add>, %51, %cst_16 [0] : vector<8x128xf32> to vector<128xf32>
    %53 = vector.shape_cast %52 : vector<128xf32> to vector<1x128xf32>
    %54 = tpu.reciprocal %53 {approx = true} : vector<1x128xf32> -> vector<1x128xf32>
    %55 = vector.broadcast %54 : vector<1x128xf32> to vector<8x128xf32>
    %56 = arith.mulf %51, %55 : vector<8x128xf32>
    %c2 = arith.constant 2 : index
    %c0_17 = arith.constant 0 : index
    %c0_18 = arith.constant 0 : index
    %57 = vector.load %arg2[%c2, %c0_17, %c0_18] : memref<8x8x128xf32, #tpu.memory_space<vmem>>, vector<1x8x128xf32>
    %58 = vector.shape_cast %57 : vector<1x8x128xf32> to vector<8x128xf32>
    %59 = vector.shape_cast %56 : vector<8x128xf32> to vector<1x8x128xf32>
    tpu.vector_store %arg2[%c2, %c0_17, %c0_18], %59 {strides = array<i32>} : memref<8x8x128xf32, #tpu.memory_space<vmem>>, vector<1x8x128xf32>,
    %60 = vector.extract_strided_slice %8 {offsets = [3, 0, 0], sizes = [1, 128, 128], strides = [1, 1, 1]} : vector<8x128x128xf32> to vector<1x128x128xf32>
    %61 = vector.broadcast %60 : vector<1x128x128xf32> to vector<8x128x128xf32>
    %62 = arith.mulf %8, %61 : vector<8x128x128xf32>
    %cst_19 = arith.constant dense<0.000000e+00> : vector<8x128xf32>
    %63 = vector.multi_reduction <add>, %62, %cst_19 [1] : vector<8x128x128xf32> to vector<8x128xf32>
    %cst_20 = arith.constant dense<0xFF800000> : vector<128xf32>
    %64 = vector.multi_reduction <maximumf>, %63, %cst_20 [0] : vector<8x128xf32> to vector<128xf32>
    %65 = vector.shape_cast %64 : vector<128xf32> to vector<1x128xf32>
    %66 = vector.broadcast %65 : vector<1x128xf32> to vector<8x128xf32>
    %67 = arith.subf %63, %66 : vector<8x128xf32>
    %68 = math.exp %67 : vector<8x128xf32>
    %cst_21 = arith.constant dense<0.000000e+00> : vector<128xf32>
    %69 = vector.multi_reduction <add>, %68, %cst_21 [0] : vector<8x128xf32> to vector<128xf32>
    %70 = vector.shape_cast %69 : vector<128xf32> to vector<1x128xf32>
    %71 = tpu.reciprocal %70 {approx = true} : vector<1x128xf32> -> vector<1x128xf32>
    %72 = vector.broadcast %71 : vector<1x128xf32> to vector<8x128xf32>
    %73 = arith.mulf %68, %72 : vector<8x128xf32>
    %c3 = arith.constant 3 : index
    %c0_22 = arith.constant 0 : index
    %c0_23 = arith.constant 0 : index
    %74 = vector.load %arg2[%c3, %c0_22, %c0_23] : memref<8x8x128xf32, #tpu.memory_space<vmem>>, vector<1x8x128xf32>
    %75 = vector.shape_cast %74 : vector<1x8x128xf32> to vector<8x128xf32>
    %76 = vector.shape_cast %73 : vector<8x128xf32> to vector<1x8x128xf32>
    tpu.vector_store %arg2[%c3, %c0_22, %c0_23], %76 {strides = array<i32>} : memref<8x8x128xf32, #tpu.memory_space<vmem>>, vector<1x8x128xf32>,
    %77 = vector.extract_strided_slice %8 {offsets = [4, 0, 0], sizes = [1, 128, 128], strides = [1, 1, 1]} : vector<8x128x128xf32> to vector<1x128x128xf32>
    %78 = vector.broadcast %77 : vector<1x128x128xf32> to vector<8x128x128xf32>
    %79 = arith.mulf %8, %78 : vector<8x128x128xf32>
    %cst_24 = arith.constant dense<0.000000e+00> : vector<8x128xf32>
    %80 = vector.multi_reduction <add>, %79, %cst_24 [1] : vector<8x128x128xf32> to vector<8x128xf32>
    %cst_25 = arith.constant dense<0xFF800000> : vector<128xf32>
    %81 = vector.multi_reduction <maximumf>, %80, %cst_25 [0] : vector<8x128xf32> to vector<128xf32>
    %82 = vector.shape_cast %81 : vector<128xf32> to vector<1x128xf32>
    %83 = vector.broadcast %82 : vector<1x128xf32> to vector<8x128xf32>
    %84 = arith.subf %80, %83 : vector<8x128xf32>
    %85 = math.exp %84 : vector<8x128xf32>
    %cst_26 = arith.constant dense<0.000000e+00> : vector<128xf32>
    %86 = vector.multi_reduction <add>, %85, %cst_26 [0] : vector<8x128xf32> to vector<128xf32>
    %87 = vector.shape_cast %86 : vector<128xf32> to vector<1x128xf32>
    %88 = tpu.reciprocal %87 {approx = true} : vector<1x128xf32> -> vector<1x128xf32>
    %89 = vector.broadcast %88 : vector<1x128xf32> to vector<8x128xf32>
    %90 = arith.mulf %85, %89 : vector<8x128xf32>
    %c4 = arith.constant 4 : index
    %c0_27 = arith.constant 0 : index
    %c0_28 = arith.constant 0 : index
    %91 = vector.load %arg2[%c4, %c0_27, %c0_28] : memref<8x8x128xf32, #tpu.memory_space<vmem>>, vector<1x8x128xf32>
    %92 = vector.shape_cast %91 : vector<1x8x128xf32> to vector<8x128xf32>
    %93 = vector.shape_cast %90 : vector<8x128xf32> to vector<1x8x128xf32>
    tpu.vector_store %arg2[%c4, %c0_27, %c0_28], %93 {strides = array<i32>} : memref<8x8x128xf32, #tpu.memory_space<vmem>>, vector<1x8x128xf32>,
    %94 = vector.extract_strided_slice %8 {offsets = [5, 0, 0], sizes = [1, 128, 128], strides = [1, 1, 1]} : vector<8x128x128xf32> to vector<1x128x128xf32>
    %95 = vector.broadcast %94 : vector<1x128x128xf32> to vector<8x128x128xf32>
    %96 = arith.mulf %8, %95 : vector<8x128x128xf32>
    %cst_29 = arith.constant dense<0.000000e+00> : vector<8x128xf32>
    %97 = vector.multi_reduction <add>, %96, %cst_29 [1] : vector<8x128x128xf32> to vector<8x128xf32>
    %cst_30 = arith.constant dense<0xFF800000> : vector<128xf32>
    %98 = vector.multi_reduction <maximumf>, %97, %cst_30 [0] : vector<8x128xf32> to vector<128xf32>
    %99 = vector.shape_cast %98 : vector<128xf32> to vector<1x128xf32>
    %100 = vector.broadcast %99 : vector<1x128xf32> to vector<8x128xf32>
    %101 = arith.subf %97, %100 : vector<8x128xf32>
    %102 = math.exp %101 : vector<8x128xf32>
    %cst_31 = arith.constant dense<0.000000e+00> : vector<128xf32>
    %103 = vector.multi_reduction <add>, %102, %cst_31 [0] : vector<8x128xf32> to vector<128xf32>
    %104 = vector.shape_cast %103 : vector<128xf32> to vector<1x128xf32>
    %105 = tpu.reciprocal %104 {approx = true} : vector<1x128xf32> -> vector<1x128xf32>
    %106 = vector.broadcast %105 : vector<1x128xf32> to vector<8x128xf32>
    %107 = arith.mulf %102, %106 : vector<8x128xf32>
    %c5 = arith.constant 5 : index
    %c0_32 = arith.constant 0 : index
    %c0_33 = arith.constant 0 : index
    %108 = vector.load %arg2[%c5, %c0_32, %c0_33] : memref<8x8x128xf32, #tpu.memory_space<vmem>>, vector<1x8x128xf32>
    %109 = vector.shape_cast %108 : vector<1x8x128xf32> to vector<8x128xf32>
    %110 = vector.shape_cast %107 : vector<8x128xf32> to vector<1x8x128xf32>
    tpu.vector_store %arg2[%c5, %c0_32, %c0_33], %110 {strides = array<i32>} : memref<8x8x128xf32, #tpu.memory_space<vmem>>, vector<1x8x128xf32>,
    %111 = vector.extract_strided_slice %8 {offsets = [6, 0, 0], sizes = [1, 128, 128], strides = [1, 1, 1]} : vector<8x128x128xf32> to vector<1x128x128xf32>
    %112 = vector.broadcast %111 : vector<1x128x128xf32> to vector<8x128x128xf32>
    %113 = arith.mulf %8, %112 : vector<8x128x128xf32>
    %cst_34 = arith.constant dense<0.000000e+00> : vector<8x128xf32>
    %114 = vector.multi_reduction <add>, %113, %cst_34 [1] : vector<8x128x128xf32> to vector<8x128xf32>
    %cst_35 = arith.constant dense<0xFF800000> : vector<128xf32>
    %115 = vector.multi_reduction <maximumf>, %114, %cst_35 [0] : vector<8x128xf32> to vector<128xf32>
    %116 = vector.shape_cast %115 : vector<128xf32> to vector<1x128xf32>
    %117 = vector.broadcast %116 : vector<1x128xf32> to vector<8x128xf32>
    %118 = arith.subf %114, %117 : vector<8x128xf32>
    %119 = math.exp %118 : vector<8x128xf32>
    %cst_36 = arith.constant dense<0.000000e+00> : vector<128xf32>
    %120 = vector.multi_reduction <add>, %119, %cst_36 [0] : vector<8x128xf32> to vector<128xf32>
    %121 = vector.shape_cast %120 : vector<128xf32> to vector<1x128xf32>
    %122 = tpu.reciprocal %121 {approx = true} : vector<1x128xf32> -> vector<1x128xf32>
    %123 = vector.broadcast %122 : vector<1x128xf32> to vector<8x128xf32>
    %124 = arith.mulf %119, %123 : vector<8x128xf32>
    %c6 = arith.constant 6 : index
    %c0_37 = arith.constant 0 : index
    %c0_38 = arith.constant 0 : index
    %125 = vector.load %arg2[%c6, %c0_37, %c0_38] : memref<8x8x128xf32, #tpu.memory_space<vmem>>, vector<1x8x128xf32>
    %126 = vector.shape_cast %125 : vector<1x8x128xf32> to vector<8x128xf32>
    %127 = vector.shape_cast %124 : vector<8x128xf32> to vector<1x8x128xf32>
    tpu.vector_store %arg2[%c6, %c0_37, %c0_38], %127 {strides = array<i32>} : memref<8x8x128xf32, #tpu.memory_space<vmem>>, vector<1x8x128xf32>,
    %128 = vector.extract_strided_slice %8 {offsets = [7, 0, 0], sizes = [1, 128, 128], strides = [1, 1, 1]} : vector<8x128x128xf32> to vector<1x128x128xf32>
    %129 = vector.broadcast %128 : vector<1x128x128xf32> to vector<8x128x128xf32>
    %130 = arith.mulf %8, %129 : vector<8x128x128xf32>
    %cst_39 = arith.constant dense<0.000000e+00> : vector<8x128xf32>
    %131 = vector.multi_reduction <add>, %130, %cst_39 [1] : vector<8x128x128xf32> to vector<8x128xf32>
    %cst_40 = arith.constant dense<0xFF800000> : vector<128xf32>
    %132 = vector.multi_reduction <maximumf>, %131, %cst_40 [0] : vector<8x128xf32> to vector<128xf32>
    %133 = vector.shape_cast %132 : vector<128xf32> to vector<1x128xf32>
    %134 = vector.broadcast %133 : vector<1x128xf32> to vector<8x128xf32>
    %135 = arith.subf %131, %134 : vector<8x128xf32>
    %136 = math.exp %135 : vector<8x128xf32>
    %cst_41 = arith.constant dense<0.000000e+00> : vector<128xf32>
    %137 = vector.multi_reduction <add>, %136, %cst_41 [0] : vector<8x128xf32> to vector<128xf32>
    %138 = vector.shape_cast %137 : vector<128xf32> to vector<1x128xf32>
    %139 = tpu.reciprocal %138 {approx = true} : vector<1x128xf32> -> vector<1x128xf32>
    %140 = vector.broadcast %139 : vector<1x128xf32> to vector<8x128xf32>
    %141 = arith.mulf %136, %140 : vector<8x128xf32>
    %c7 = arith.constant 7 : index
    %c0_42 = arith.constant 0 : index
    %c0_43 = arith.constant 0 : index
    %142 = vector.load %arg2[%c7, %c0_42, %c0_43] : memref<8x8x128xf32, #tpu.memory_space<vmem>>, vector<1x8x128xf32>
    %143 = vector.shape_cast %142 : vector<1x8x128xf32> to vector<8x128xf32>
    %144 = vector.shape_cast %141 : vector<8x128xf32> to vector<1x8x128xf32>
    tpu.vector_store %arg2[%c7, %c0_42, %c0_43], %144 {strides = array<i32>} : memref<8x8x128xf32, #tpu.memory_space<vmem>>, vector<1x8x128xf32>,
    return
  }
  func.func @transform_0(%arg0: i32) -> (i32, i32, i32) {
    %c0_i32 = arith.constant 0 : i32
    %c0_i32_0 = arith.constant 0 : i32
    %c0_i32_1 = arith.constant 0 : i32
    return %c0_i32, %c0_i32_0, %arg0 : i32, i32, i32
  }
  func.func @transform_1(%arg0: i32) -> (i32, i32, i32) {
    %c0_i32 = arith.constant 0 : i32
    %c0_i32_0 = arith.constant 0 : i32
    %c0_i32_1 = arith.constant 0 : i32
    return %c0_i32, %c0_i32_0, %arg0 : i32, i32, i32
  }
}

</mosaic_0001>

<llo_original>
// kernel: spatial_attention_layer.1
$region0: #{spatial_attention_layer.1}
  #allocation0 [shape = 'u32[]', space=smem, size = 0x4, offset = 0x4, fixed_abs, tag = 'smem constant byte address 0x4 - core index']
  #allocation1 [shape = 'u32[72,128]{1,0:T(1,128)}', space=vmem, size = 0x9000, scoped, tag = 'internal scratch']
  %s0 = inlined_call_operand.hbm [shape: f32[8,128,256], index: 0, kind: input, shape index: {}]
  %s1 = inlined_call_operand.hbm [shape: f32[8,8,256], index: 1, kind: output, shape index: {}]
  %s2 = sld [smem:[#allocation0]]
  $region41: #{spatial_attention_layer.1} parent=0
    _
  %s4 = ssub.s32 1, %s2
  %s5 = scalar_select 0, %s4, %s2
  $region1: #{spatial_attention_layer.1} parent=0
    #allocation2 [shape = 'u8[1048576]{0}', space=vmem, size = 0x100000, scoped, tag = 'input window, operand 0']
    #allocation3 [shape = 's32[2]{0}', space=sflag, size = 0x8, scoped, tag = 'scoped memory for spatial_attention_layer.1']
    #allocation4 [shape = 's32[2]{0}', space=sflag, size = 0x8, scoped, tag = 'scoped memory for spatial_attention_layer.1']
    #allocation5 [shape = 'u8[65536]{0}', space=vmem, size = 0x10000, scoped, tag = 'output window, operand 0']
    %6 = vsyncpa [#allocation3], 0
    %s7 = scalar_lea.sflag [#allocation3], 1
    %8 = vsyncpa %s7, 0
    %9 = vsyncpa [#allocation4], 0
    %s10 = scalar_lea.sflag [#allocation4], 1
    %11 = vsyncpa %s10, 0
    loop: start=0, step=1, limit=4
    $region2: #{spatial_attention_layer.1} parent=1 // loop_pre_header
      _
    $region3: #{spatial_attention_layer.1} parent=1 // loop_header
      %s13 = sphi 0, %s17
      %p14 = scmp.ge.s32.totalorder %s13, 4
      %s23 = sphi 0, %s25
      %s26 = sphi 0, %s23
      %s27 = sphi 0, %s26
      %s43 = sphi 0, %s27
      %s49 = sphi 0, %s51
      %s52 = sphi 0, %s49
      %s53 = sphi 0, %s52
      %s69 = sphi 0, %s53
    $region4: #{spatial_attention_layer.1} parent=1 // loop_header_branch
      %16 = sbr.rel (%p14) target = $region8
    $region5: #{spatial_attention_layer.1} parent=1 // loop_body
      %s18 = ssub.s32 %s13, 1
      %s19 = ssub.s32 %s13, 2
      %s20 = sadd.s32 %s13, 1
      %s21 = ssub.s32 %s13, %s20
      %p22 = scmp.eq.s32.totalorder %s21, 0
      %s24 = sadd.s32 %s23, 1
      %s25 = scalar_select %p22, %s23, %s24
      %p28 = pneg %p22
      %p29 = scmp.eq.s32.totalorder %s13, 1
      %p30 = por %p28, %p29
      %p31 = scmp.ne.s32.totalorder %s23, %s26
      %p32 = scmp.eq.s32.totalorder %s13, 0
      %p33 = por %p31, %p32
      %p34 = scmp.ne.s32.totalorder %s23, %s26
      %p35 = scmp.eq.s32.totalorder %s18, 1
      %p36 = por %p34, %p35
      %p37 = scmp.ne.s32.totalorder %s26, %s27
      %p38 = scmp.eq.s32.totalorder %s18, 0
      %p39 = por %p37, %p38
      %p40 = scmp.ne.s32.totalorder %s26, %s27
      %p41 = scmp.eq.s32.totalorder %s19, 1
      %p42 = por %p40, %p41
      %p44 = scmp.ne.s32.totalorder %s27, %s43
      %p45 = scmp.eq.s32.totalorder %s19, 0
      %p46 = por %p44, %p45
      %s47 = ssub.s32 %s13, %s20
      %p48 = scmp.eq.s32.totalorder %s47, 0
      %s50 = sadd.s32 %s49, 1
      %s51 = scalar_select %p48, %s49, %s50
      %p54 = pneg %p48
      %p55 = scmp.eq.s32.totalorder %s13, 1
      %p56 = por %p54, %p55
      %p57 = scmp.ne.s32.totalorder %s49, %s52
      %p58 = scmp.eq.s32.totalorder %s13, 0
      %p59 = por %p57, %p58
      %p60 = scmp.ne.s32.totalorder %s49, %s52
      %p61 = scmp.eq.s32.totalorder %s18, 1
      %p62 = por %p60, %p61
      %p63 = scmp.ne.s32.totalorder %s52, %s53
      %p64 = scmp.eq.s32.totalorder %s18, 0
      %p65 = por %p63, %p64
      %p66 = scmp.ne.s32.totalorder %s52, %s53
      %p67 = scmp.eq.s32.totalorder %s19, 1
      %p68 = por %p66, %p67
      %p70 = scmp.ne.s32.totalorder %s53, %s69
      %p71 = scmp.eq.s32.totalorder %s19, 0
      %p72 = por %p70, %p71
      %p73 = scmp.le.s32.totalorder 1, %s13
      %p74 = scmp.lt.s32.totalorder %s13, 3
      %p75 = pnand %p73, %p74
      %p76 = pneg %p75
      // Predicated region
      $region9: #{spatial_attention_layer.1} parent=5 // pred_check
        _
      $region10: #{spatial_attention_layer.1} parent=5 // pred_check_branch
        %78 = sbr.rel (%p75) target = $region12
      $region11: #{spatial_attention_layer.1} parent=5 // pred_region
        %s79 = ssub.s32 %s13, 1
      $region12: #{spatial_attention_layer.1} parent=5 // pred_fallthru
        _
      %p80 = scmp.lt.s32.totalorder %s13, 2
      // Predicated region
      $region13: #{spatial_attention_layer.1} parent=5 // pred_check
        %p81 = pneg %p80
      $region14: #{spatial_attention_layer.1} parent=5 // pred_check_branch
        %83 = sbr.rel (%p81) target = $region16
      $region15: #{spatial_attention_layer.1} parent=5 // pred_region
        // Predicated region
        $region17: #{spatial_attention_layer.1} parent=15 // pred_check
          %p84 = pneg %p33
        $region18: #{spatial_attention_layer.1} parent=15 // pred_check_branch
          %86 = sbr.rel (%p84) target = $region20
        $region19: #{spatial_attention_layer.1} parent=15 // pred_region
          %s87 = sand.u32 %s23, 1
          %s88 = scalar_lea.sflag [#allocation3], %s87
          %s89 = sand.u32 %s23, 1
          %s90 = smul.addr %s89, 1024
          %s91 = scalar_lea.vmem [#allocation2], %s90
          %93 = vsyncadd %s88, 0
          %s94 = smul.addr %s13, 8
          %s95 = scalar_lea.hbm %s0, %s94
          %s96 = sshll.u32 %s95, 4
          %s97 = int_to_ptr.hbm [resolvable:$true] %s96
          %s98 = sshll.u32 %s91, 4
          %s99 = int_to_ptr.vmem [resolvable:$true] %s98
          %104 = dma.hbm_to_vmem [thread:$0]  %s97, 16384, %s99, %s88, 256, 128, 8
        $region20: #{spatial_attention_layer.1} parent=15 // pred_fallthru
          _
      $region16: #{spatial_attention_layer.1} parent=5 // pred_fallthru
        _
      %p105 = scmp.le.s32.totalorder 1, %s13
      %p106 = scmp.lt.s32.totalorder %s13, 3
      %p107 = pnand %p105, %p106
      %p108 = pneg %p107
      // Predicated region
      $region21: #{spatial_attention_layer.1} parent=5 // pred_check
        _
      $region22: #{spatial_attention_layer.1} parent=5 // pred_check_branch
        %110 = sbr.rel (%p107) target = $region24
      $region23: #{spatial_attention_layer.1} parent=5 // pred_region
        %s111 = ssub.s32 %s13, 1
        %s112 = sand.u32 %s26, 1
        %s113 = scalar_lea.sflag [#allocation3], %s112
        %s114 = sand.u32 %s26, 1
        %s115 = smul.addr %s114, 1024
        %s116 = scalar_lea.vmem [#allocation2], %s115
        // Predicated region
        $region25: #{spatial_attention_layer.1} parent=23 // pred_check
          %p117 = pneg %p39
        $region26: #{spatial_attention_layer.1} parent=23 // pred_check_branch
          %119 = sbr.rel (%p117) target = $region28
        $region27: #{spatial_attention_layer.1} parent=23 // pred_region
          %121 = dma.done %s113, 16384
        $region28: #{spatial_attention_layer.1} parent=23 // pred_fallthru
          _
        %s122 = sand.u32 %s26, 1
        %s123 = scalar_lea.sflag [#allocation3], %s122
        %s124 = sand.u32 %s26, 1
        %s125 = smul.addr %s124, 1024
        %s126 = scalar_lea.vmem [#allocation2], %s125
        %p127 = pneg %p39
        %p128 = pneg %p36
        %p129 = pneg %p65
        %p130 = pneg %p62
        %s131 = sand.u32 %s52, 1
        %s132 = scalar_lea.sflag [#allocation4], %s131
        %s133 = sand.u32 %s52, 1
        %s134 = smul.addr %s133, 64
        %s135 = scalar_lea.vmem [#allocation5], %s134
        %v136 = vld [vmem:[%s116] sm:$0xff]
        %v137 = vld [vmem:[%s116 + $0x8] sm:$0xff]
        %v138 = vld [vmem:[%s116 + $0x10] sm:$0xff]
        %v139 = vld [vmem:[%s116 + $0x18] sm:$0xff]
        %v140 = vld [vmem:[%s116 + $0x20] sm:$0xff]
        %v141 = vld [vmem:[%s116 + $0x28] sm:$0xff]
        %v142 = vld [vmem:[%s116 + $0x30] sm:$0xff]
        %v143 = vld [vmem:[%s116 + $0x38] sm:$0xff]
        %v144 = vld [vmem:[%s116 + $0x40] sm:$0xff]
        %v145 = vld [vmem:[%s116 + $0x48] sm:$0xff]
        %v146 = vld [vmem:[%s116 + $0x50] sm:$0xff]
        %v147 = vld [vmem:[%s116 + $0x58] sm:$0xff]
        %v148 = vld [vmem:[%s116 + $0x60] sm:$0xff]
        %v149 = vld [vmem:[%s116 + $0x68] sm:$0xff]
        %v150 = vld [vmem:[%s116 + $0x70] sm:$0xff]
        %v151 = vld [vmem:[%s116 + $0x78] sm:$0xff]
        %v152 = vld [vmem:[%s116 + $0x80] sm:$0xff]
        %v153 = vld [vmem:[%s116 + $0x88] sm:$0xff]
        %v154 = vld [vmem:[%s116 + $0x90] sm:$0xff]
        %v155 = vld [vmem:[%s116 + $0x98] sm:$0xff]
        %v156 = vld [vmem:[%s116 + $0xa0] sm:$0xff]
        %v157 = vld [vmem:[%s116 + $0xa8] sm:$0xff]
        %v158 = vld [vmem:[%s116 + $0xb0] sm:$0xff]
        %v159 = vld [vmem:[%s116 + $0xb8] sm:$0xff]
        %v160 = vld [vmem:[%s116 + $0xc0] sm:$0xff]
        %v161 = vld [vmem:[%s116 + $0xc8] sm:$0xff]
        %v162 = vld [vmem:[%s116 + $0xd0] sm:$0xff]
        %v163 = vld [vmem:[%s116 + $0xd8] sm:$0xff]
        %v164 = vld [vmem:[%s116 + $0xe0] sm:$0xff]
        %v165 = vld [vmem:[%s116 + $0xe8] sm:$0xff]
        %v166 = vld [vmem:[%s116 + $0xf0] sm:$0xff]
        %v167 = vld [vmem:[%s116 + $0xf8] sm:$0xff]
        %v168 = vld [vmem:[%s116 + $0x100] sm:$0xff]
        %v169 = vld [vmem:[%s116 + $0x108] sm:$0xff]
        %v170 = vld [vmem:[%s116 + $0x110] sm:$0xff]
        %v171 = vld [vmem:[%s116 + $0x118] sm:$0xff]
        %v172 = vld [vmem:[%s116 + $0x120] sm:$0xff]
        %v173 = vld [vmem:[%s116 + $0x128] sm:$0xff]
        %v174 = vld [vmem:[%s116 + $0x130] sm:$0xff]
        %v175 = vld [vmem:[%s116 + $0x138] sm:$0xff]
        %v176 = vld [vmem:[%s116 + $0x140] sm:$0xff]
        %v177 = vld [vmem:[%s116 + $0x148] sm:$0xff]
        %v178 = vld [vmem:[%s116 + $0x150] sm:$0xff]
        %v179 = vld [vmem:[%s116 + $0x158] sm:$0xff]
        %v180 = vld [vmem:[%s116 + $0x160] sm:$0xff]
        %v181 = vld [vmem:[%s116 + $0x168] sm:$0xff]
        %v182 = vld [vmem:[%s116 + $0x170] sm:$0xff]
        %v183 = vld [vmem:[%s116 + $0x178] sm:$0xff]
        %v184 = vld [vmem:[%s116 + $0x180] sm:$0xff]
        %v185 = vld [vmem:[%s116 + $0x188] sm:$0xff]
        %v186 = vld [vmem:[%s116 + $0x190] sm:$0xff]
        %v187 = vld [vmem:[%s116 + $0x198] sm:$0xff]
        %v188 = vld [vmem:[%s116 + $0x1a0] sm:$0xff]
        %v189 = vld [vmem:[%s116 + $0x1a8] sm:$0xff]
        %v190 = vld [vmem:[%s116 + $0x1b0] sm:$0xff]
        %v191 = vld [vmem:[%s116 + $0x1b8] sm:$0xff]
        %v192 = vld [vmem:[%s116 + $0x1c0] sm:$0xff]
        %v193 = vld [vmem:[%s116 + $0x1c8] sm:$0xff]
        %v194 = vld [vmem:[%s116 + $0x1d0] sm:$0xff]
        %v195 = vld [vmem:[%s116 + $0x1d8] sm:$0xff]
        %v196 = vld [vmem:[%s116 + $0x1e0] sm:$0xff]
        %v197 = vld [vmem:[%s116 + $0x1e8] sm:$0xff]
        %v198 = vld [vmem:[%s116 + $0x1f0] sm:$0xff]
        %v199 = vld [vmem:[%s116 + $0x1f8] sm:$0xff]
        %v200 = vld [vmem:[%s116 + $0x200] sm:$0xff]
        %v201 = vld [vmem:[%s116 + $0x208] sm:$0xff]
        %v202 = vld [vmem:[%s116 + $0x210] sm:$0xff]
        %v203 = vld [vmem:[%s116 + $0x218] sm:$0xff]
        %v204 = vld [vmem:[%s116 + $0x220] sm:$0xff]
        %v205 = vld [vmem:[%s116 + $0x228] sm:$0xff]
        %v206 = vld [vmem:[%s116 + $0x230] sm:$0xff]
        %v207 = vld [vmem:[%s116 + $0x238] sm:$0xff]
        %v208 = vld [vmem:[%s116 + $0x240] sm:$0xff]
        %v209 = vld [vmem:[%s116 + $0x248] sm:$0xff]
        %v210 = vld [vmem:[%s116 + $0x250] sm:$0xff]
        %v211 = vld [vmem:[%s116 + $0x258] sm:$0xff]
        %v212 = vld [vmem:[%s116 + $0x260] sm:$0xff]
        %v213 = vld [vmem:[%s116 + $0x268] sm:$0xff]
        %v214 = vld [vmem:[%s116 + $0x270] sm:$0xff]
        %v215 = vld [vmem:[%s116 + $0x278] sm:$0xff]
        %v216 = vld [vmem:[%s116 + $0x280] sm:$0xff]
        %v217 = vld [vmem:[%s116 + $0x288] sm:$0xff]
        %v218 = vld [vmem:[%s116 + $0x290] sm:$0xff]
        %v219 = vld [vmem:[%s116 + $0x298] sm:$0xff]
        %v220 = vld [vmem:[%s116 + $0x2a0] sm:$0xff]
        %v221 = vld [vmem:[%s116 + $0x2a8] sm:$0xff]
        %v222 = vld [vmem:[%s116 + $0x2b0] sm:$0xff]
        %v223 = vld [vmem:[%s116 + $0x2b8] sm:$0xff]
        %v224 = vld [vmem:[%s116 + $0x2c0] sm:$0xff]
        %v225 = vld [vmem:[%s116 + $0x2c8] sm:$0xff]
        %v226 = vld [vmem:[%s116 + $0x2d0] sm:$0xff]
        %v227 = vld [vmem:[%s116 + $0x2d8] sm:$0xff]
        %v228 = vld [vmem:[%s116 + $0x2e0] sm:$0xff]
        %v229 = vld [vmem:[%s116 + $0x2e8] sm:$0xff]
        %v230 = vld [vmem:[%s116 + $0x2f0] sm:$0xff]
        %v231 = vld [vmem:[%s116 + $0x2f8] sm:$0xff]
        %v232 = vld [vmem:[%s116 + $0x300] sm:$0xff]
        %v233 = vld [vmem:[%s116 + $0x308] sm:$0xff]
        %v234 = vld [vmem:[%s116 + $0x310] sm:$0xff]
        %v235 = vld [vmem:[%s116 + $0x318] sm:$0xff]
        %v236 = vld [vmem:[%s116 + $0x320] sm:$0xff]
        %v237 = vld [vmem:[%s116 + $0x328] sm:$0xff]
        %v238 = vld [vmem:[%s116 + $0x330] sm:$0xff]
        %v239 = vld [vmem:[%s116 + $0x338] sm:$0xff]
        %v240 = vld [vmem:[%s116 + $0x340] sm:$0xff]
        %v241 = vld [vmem:[%s116 + $0x348] sm:$0xff]
        %v242 = vld [vmem:[%s116 + $0x350] sm:$0xff]
        %v243 = vld [vmem:[%s116 + $0x358] sm:$0xff]
        %v244 = vld [vmem:[%s116 + $0x360] sm:$0xff]
        %v245 = vld [vmem:[%s116 + $0x368] sm:$0xff]
        %v246 = vld [vmem:[%s116 + $0x370] sm:$0xff]
        %v247 = vld [vmem:[%s116 + $0x378] sm:$0xff]
        %v248 = vld [vmem:[%s116 + $0x380] sm:$0xff]
        %v249 = vld [vmem:[%s116 + $0x388] sm:$0xff]
        %v250 = vld [vmem:[%s116 + $0x390] sm:$0xff]
        %v251 = vld [vmem:[%s116 + $0x398] sm:$0xff]
        %v252 = vld [vmem:[%s116 + $0x3a0] sm:$0xff]
        %v253 = vld [vmem:[%s116 + $0x3a8] sm:$0xff]
        %v254 = vld [vmem:[%s116 + $0x3b0] sm:$0xff]
        %v255 = vld [vmem:[%s116 + $0x3b8] sm:$0xff]
        %v256 = vld [vmem:[%s116 + $0x3c0] sm:$0xff]
        %v257 = vld [vmem:[%s116 + $0x3c8] sm:$0xff]
        %v258 = vld [vmem:[%s116 + $0x3d0] sm:$0xff]
        %v259 = vld [vmem:[%s116 + $0x3d8] sm:$0xff]
        %v260 = vld [vmem:[%s116 + $0x3e0] sm:$0xff]
        %v261 = vld [vmem:[%s116 + $0x3e8] sm:$0xff]
        %v262 = vld [vmem:[%s116 + $0x3f0] sm:$0xff]
        %v263 = vld [vmem:[%s116 + $0x3f8] sm:$0xff]
        %v264 = vmul.f32 %v136, %v136
        %v265 = vmul.f32 %v137, %v137
        %v266 = vmul.f32 %v138, %v138
        %v267 = vmul.f32 %v139, %v139
        %v268 = vmul.f32 %v140, %v140
        %v269 = vmul.f32 %v141, %v141
        %v270 = vmul.f32 %v142, %v142
        %v271 = vmul.f32 %v143, %v143
        %v272 = vmul.f32 %v144, %v144
        %v273 = vmul.f32 %v145, %v145
        %v274 = vmul.f32 %v146, %v146
        %v275 = vmul.f32 %v147, %v147
        %v276 = vmul.f32 %v148, %v148
        %v277 = vmul.f32 %v149, %v149
        %v278 = vmul.f32 %v150, %v150
        %v279 = vmul.f32 %v151, %v151
        %v280 = vmul.f32 %v152, %v152
        %v281 = vmul.f32 %v153, %v153
        %v282 = vmul.f32 %v154, %v154
        %v283 = vmul.f32 %v155, %v155
        %v284 = vmul.f32 %v156, %v156
        %v285 = vmul.f32 %v157, %v157
        %v286 = vmul.f32 %v158, %v158
        %v287 = vmul.f32 %v159, %v159
        %v288 = vmul.f32 %v160, %v160
        %v289 = vmul.f32 %v161, %v161
        %v290 = vmul.f32 %v162, %v162
        %v291 = vmul.f32 %v163, %v163
        %v292 = vmul.f32 %v164, %v164
        %v293 = vmul.f32 %v165, %v165
        %v294 = vmul.f32 %v166, %v166
        %v295 = vmul.f32 %v167, %v167
        %v296 = vmul.f32 %v168, %v168
        %v297 = vmul.f32 %v169, %v169
        %v298 = vmul.f32 %v170, %v170
        %v299 = vmul.f32 %v171, %v171
        %v300 = vmul.f32 %v172, %v172
        %v301 = vmul.f32 %v173, %v173
        %v302 = vmul.f32 %v174, %v174
        %v303 = vmul.f32 %v175, %v175
        %v304 = vmul.f32 %v176, %v176
        %v305 = vmul.f32 %v177, %v177
        %v306 = vmul.f32 %v178, %v178
        %v307 = vmul.f32 %v179, %v179
        %v308 = vmul.f32 %v180, %v180
        %v309 = vmul.f32 %v181, %v181
        %v310 = vmul.f32 %v182, %v182
        %v311 = vmul.f32 %v183, %v183
        %v312 = vmul.f32 %v184, %v184
        %v313 = vmul.f32 %v185, %v185
        %v314 = vmul.f32 %v186, %v186
        %v315 = vmul.f32 %v187, %v187
        %v316 = vmul.f32 %v188, %v188
        %v317 = vmul.f32 %v189, %v189
        %v318 = vmul.f32 %v190, %v190
        %v319 = vmul.f32 %v191, %v191
        %v320 = vmul.f32 %v192, %v192
        %v321 = vmul.f32 %v193, %v193
        %v322 = vmul.f32 %v194, %v194
        %v323 = vmul.f32 %v195, %v195
        %v324 = vmul.f32 %v196, %v196
        %v325 = vmul.f32 %v197, %v197
        %v326 = vmul.f32 %v198, %v198
        %v327 = vmul.f32 %v199, %v199
        %v328 = vmul.f32 %v200, %v200
        %v329 = vmul.f32 %v201, %v201
        %v330 = vmul.f32 %v202, %v202
        %v331 = vmul.f32 %v203, %v203
        %v332 = vmul.f32 %v204, %v204
        %v333 = vmul.f32 %v205, %v205
        %v334 = vmul.f32 %v206, %v206
        %v335 = vmul.f32 %v207, %v207
        %v336 = vmul.f32 %v208, %v208
        %v337 = vmul.f32 %v209, %v209
        %v338 = vmul.f32 %v210, %v210
        %v339 = vmul.f32 %v211, %v211
        %v340 = vmul.f32 %v212, %v212
        %v341 = vmul.f32 %v213, %v213
        %v342 = vmul.f32 %v214, %v214
        %v343 = vmul.f32 %v215, %v215
        %v344 = vmul.f32 %v216, %v216
        %v345 = vmul.f32 %v217, %v217
        %v346 = vmul.f32 %v218, %v218
        %v347 = vmul.f32 %v219, %v219
        %v348 = vmul.f32 %v220, %v220
        %v349 = vmul.f32 %v221, %v221
        %v350 = vmul.f32 %v222, %v222
        %v351 = vmul.f32 %v223, %v223
        %v352 = vmul.f32 %v224, %v224
        %v353 = vmul.f32 %v225, %v225
        %v354 = vmul.f32 %v226, %v226
        %v355 = vmul.f32 %v227, %v227
        %v356 = vmul.f32 %v228, %v228
        %v357 = vmul.f32 %v229, %v229
        %v358 = vmul.f32 %v230, %v230
        %v359 = vmul.f32 %v231, %v231
        %v360 = vmul.f32 %v232, %v232
        %v361 = vmul.f32 %v233, %v233
        %v362 = vmul.f32 %v234, %v234
        %v363 = vmul.f32 %v235, %v235
        %v364 = vmul.f32 %v236, %v236
        %v365 = vmul.f32 %v237, %v237
        %v366 = vmul.f32 %v238, %v238
        %v367 = vmul.f32 %v239, %v239
        %v368 = vmul.f32 %v240, %v240
        %v369 = vmul.f32 %v241, %v241
        %v370 = vmul.f32 %v242, %v242
        %v371 = vmul.f32 %v243, %v243
        %v372 = vmul.f32 %v244, %v244
        %v373 = vmul.f32 %v245, %v245
        %v374 = vmul.f32 %v246, %v246
        %v375 = vmul.f32 %v247, %v247
        %v376 = vmul.f32 %v248, %v248
        %v377 = vmul.f32 %v249, %v249
        %v378 = vmul.f32 %v250, %v250
        %v379 = vmul.f32 %v251, %v251
        %v380 = vmul.f32 %v252, %v252
        %v381 = vmul.f32 %v253, %v253
        %v382 = vmul.f32 %v254, %v254
        %v383 = vmul.f32 %v255, %v255
        %v384 = vmul.f32 %v256, %v256
        %v385 = vmul.f32 %v257, %v257
        %v386 = vmul.f32 %v258, %v258
        %v387 = vmul.f32 %v259, %v259
        %v388 = vmul.f32 %v260, %v260
        %v389 = vmul.f32 %v261, %v261
        %v390 = vmul.f32 %v262, %v262
        %v391 = vmul.f32 %v263, %v263
        %v392 = vadd.f32 %v264, %v265
        %v393 = vadd.f32 %v392, %v266
        %v394 = vadd.f32 %v393, %v267
        %v395 = vadd.f32 %v394, %v268
        %v396 = vadd.f32 %v395, %v269
        %v397 = vadd.f32 %v396, %v270
        %v398 = vadd.f32 %v397, %v271
        %v399 = vadd.f32 %v398, %v272
        %v400 = vadd.f32 %v399, %v273
        %v401 = vadd.f32 %v400, %v274
        %v402 = vadd.f32 %v401, %v275
        %v403 = vadd.f32 %v402, %v276
        %v404 = vadd.f32 %v403, %v277
        %v405 = vadd.f32 %v404, %v278
        %v406 = vadd.f32 %v405, %v279
        %v407 = vrot.slane %v406, 4
        %v408 = vadd.f32 %v406, %v407
        %v409 = vrot.slane %v408, 2
        %v410 = vadd.f32 %v408, %v409
        %v411 = vrot.slane %v410, 1
        %v412 = vadd.f32 %v410, %v411
        %v413 = vadd.f32 %v280, %v281
        %v414 = vadd.f32 %v413, %v282
        %v415 = vadd.f32 %v414, %v283
        %v416 = vadd.f32 %v415, %v284
        %v417 = vadd.f32 %v416, %v285
        %v418 = vadd.f32 %v417, %v286
        %v419 = vadd.f32 %v418, %v287
        %v420 = vadd.f32 %v419, %v288
        %v421 = vadd.f32 %v420, %v289
        %v422 = vadd.f32 %v421, %v290
        %v423 = vadd.f32 %v422, %v291
        %v424 = vadd.f32 %v423, %v292
        %v425 = vadd.f32 %v424, %v293
        %v426 = vadd.f32 %v425, %v294
        %v427 = vadd.f32 %v426, %v295
        %v428 = vrot.slane %v427, 4
        %v429 = vadd.f32 %v427, %v428
        %v430 = vrot.slane %v429, 2
        %v431 = vadd.f32 %v429, %v430
        %v432 = vrot.slane %v431, 1
        %v433 = vadd.f32 %v431, %v432
        %v434 = vadd.f32 %v296, %v297
        %v435 = vadd.f32 %v434, %v298
        %v436 = vadd.f32 %v435, %v299
        %v437 = vadd.f32 %v436, %v300
        %v438 = vadd.f32 %v437, %v301
        %v439 = vadd.f32 %v438, %v302
        %v440 = vadd.f32 %v439, %v303
        %v441 = vadd.f32 %v440, %v304
        %v442 = vadd.f32 %v441, %v305
        %v443 = vadd.f32 %v442, %v306
        %v444 = vadd.f32 %v443, %v307
        %v445 = vadd.f32 %v444, %v308
        %v446 = vadd.f32 %v445, %v309
        %v447 = vadd.f32 %v446, %v310
        %v448 = vadd.f32 %v447, %v311
        %v449 = vrot.slane %v448, 4
        %v450 = vadd.f32 %v448, %v449
        %v451 = vrot.slane %v450, 2
        %v452 = vadd.f32 %v450, %v451
        %v453 = vrot.slane %v452, 1
        %v454 = vadd.f32 %v452, %v453
        %v455 = vadd.f32 %v312, %v313
        %v456 = vadd.f32 %v455, %v314
        %v457 = vadd.f32 %v456, %v315
        %v458 = vadd.f32 %v457, %v316
        %v459 = vadd.f32 %v458, %v317
        %v460 = vadd.f32 %v459, %v318
        %v461 = vadd.f32 %v460, %v319
        %v462 = vadd.f32 %v461, %v320
        %v463 = vadd.f32 %v462, %v321
        %v464 = vadd.f32 %v463, %v322
        %v465 = vadd.f32 %v464, %v323
        %v466 = vadd.f32 %v465, %v324
        %v467 = vadd.f32 %v466, %v325
        %v468 = vadd.f32 %v467, %v326
        %v469 = vadd.f32 %v468, %v327
        %v470 = vrot.slane %v469, 4
        %v471 = vadd.f32 %v469, %v470
        %v472 = vrot.slane %v471, 2
        %v473 = vadd.f32 %v471, %v472
        %v474 = vrot.slane %v473, 1
        %v475 = vadd.f32 %v473, %v474
        %v476 = vadd.f32 %v328, %v329
        %v477 = vadd.f32 %v476, %v330
        %v478 = vadd.f32 %v477, %v331
        %v479 = vadd.f32 %v478, %v332
        %v480 = vadd.f32 %v479, %v333
        %v481 = vadd.f32 %v480, %v334
        %v482 = vadd.f32 %v481, %v335
        %v483 = vadd.f32 %v482, %v336
        %v484 = vadd.f32 %v483, %v337
        %v485 = vadd.f32 %v484, %v338
        %v486 = vadd.f32 %v485, %v339
        %v487 = vadd.f32 %v486, %v340
        %v488 = vadd.f32 %v487, %v341
        %v489 = vadd.f32 %v488, %v342
        %v490 = vadd.f32 %v489, %v343
        %v491 = vrot.slane %v490, 4
        %v492 = vadd.f32 %v490, %v491
        %v493 = vrot.slane %v492, 2
        %v494 = vadd.f32 %v492, %v493
        %v495 = vrot.slane %v494, 1
        %v496 = vadd.f32 %v494, %v495
        %v497 = vadd.f32 %v344, %v345
        %v498 = vadd.f32 %v497, %v346
        %v499 = vadd.f32 %v498, %v347
        %v500 = vadd.f32 %v499, %v348
        %v501 = vadd.f32 %v500, %v349
        %v502 = vadd.f32 %v501, %v350
        %v503 = vadd.f32 %v502, %v351
        %v504 = vadd.f32 %v503, %v352
        %v505 = vadd.f32 %v504, %v353
        %v506 = vadd.f32 %v505, %v354
        %v507 = vadd.f32 %v506, %v355
        %v508 = vadd.f32 %v507, %v356
        %v509 = vadd.f32 %v508, %v357
        %v510 = vadd.f32 %v509, %v358
        %v511 = vadd.f32 %v510, %v359
        %v512 = vrot.slane %v511, 4
        %v513 = vadd.f32 %v511, %v512
        %v514 = vrot.slane %v513, 2
        %v515 = vadd.f32 %v513, %v514
        %v516 = vrot.slane %v515, 1
        %v517 = vadd.f32 %v515, %v516
        %v518 = vadd.f32 %v360, %v361
        %v519 = vadd.f32 %v518, %v362
        %v520 = vadd.f32 %v519, %v363
        %v521 = vadd.f32 %v520, %v364
        %v522 = vadd.f32 %v521, %v365
        %v523 = vadd.f32 %v522, %v366
        %v524 = vadd.f32 %v523, %v367
        %v525 = vadd.f32 %v524, %v368
        %v526 = vadd.f32 %v525, %v369
        %v527 = vadd.f32 %v526, %v370
        %v528 = vadd.f32 %v527, %v371
        %v529 = vadd.f32 %v528, %v372
        %v530 = vadd.f32 %v529, %v373
        %v531 = vadd.f32 %v530, %v374
        %v532 = vadd.f32 %v531, %v375
        %v533 = vrot.slane %v532, 4
        %v534 = vadd.f32 %v532, %v533
        %v535 = vrot.slane %v534, 2
        %v536 = vadd.f32 %v534, %v535
        %v537 = vrot.slane %v536, 1
        %v538 = vadd.f32 %v536, %v537
        %v539 = vadd.f32 %v376, %v377
        %v540 = vadd.f32 %v539, %v378
        %v541 = vadd.f32 %v540, %v379
        %v542 = vadd.f32 %v541, %v380
        %v543 = vadd.f32 %v542, %v381
        %v544 = vadd.f32 %v543, %v382
        %v545 = vadd.f32 %v544, %v383
        %v546 = vadd.f32 %v545, %v384
        %v547 = vadd.f32 %v546, %v385
        %v548 = vadd.f32 %v547, %v386
        %v549 = vadd.f32 %v548, %v387
        %v550 = vadd.f32 %v549, %v388
        %v551 = vadd.f32 %v550, %v389
        %v552 = vadd.f32 %v551, %v390
        %v553 = vadd.f32 %v552, %v391
        %v554 = vrot.slane %v553, 4
        %v555 = vadd.f32 %v553, %v554
        %v556 = vrot.slane %v555, 2
        %v557 = vadd.f32 %v555, %v556
        %v558 = vrot.slane %v557, 1
        %v559 = vadd.f32 %v557, %v558
        %v560 = vmax.f32 %v412, 1e-24
        %v561 = vmax.f32 %v433, 1e-24
        %v562 = vmax.f32 %v454, 1e-24
        %v563 = vmax.f32 %v475, 1e-24
        %v564 = vmax.f32 %v496, 1e-24
        %v565 = vmax.f32 %v517, 1e-24
        %v566 = vmax.f32 %v538, 1e-24
        %v567 = vmax.f32 %v559, 1e-24
        %v568 = vrsqrt.pop %v560
        %v569 = vmul.f32 %v568, %v560
        %v570 = vmul.f32 %v569, %v568
        %v571 = vmul.f32 0.5, %v570
        %v572 = vsub.f32 1.5, %v571
        %v573 = vmul.f32 %v568, %v572
        %vm574 = vweird.f32 %v560
        %vm575 = vweird.f32 %v568
        %vm576 = vmor %vm574, %vm575
        %v577 = vsel %vm576, %v568, %v573
        %v578 = vrsqrt.pop %v561
        %v579 = vmul.f32 %v578, %v561
        %v580 = vmul.f32 %v579, %v578
        %v581 = vmul.f32 0.5, %v580
        %v582 = vsub.f32 1.5, %v581
        %v583 = vmul.f32 %v578, %v582
        %vm584 = vweird.f32 %v561
        %vm585 = vweird.f32 %v578
        %vm586 = vmor %vm584, %vm585
        %v587 = vsel %vm586, %v578, %v583
        %v588 = vrsqrt.pop %v562
        %v589 = vmul.f32 %v588, %v562
        %v590 = vmul.f32 %v589, %v588
        %v591 = vmul.f32 0.5, %v590
        %v592 = vsub.f32 1.5, %v591
        %v593 = vmul.f32 %v588, %v592
        %vm594 = vweird.f32 %v562
        %vm595 = vweird.f32 %v588
        %vm596 = vmor %vm594, %vm595
        %v597 = vsel %vm596, %v588, %v593
        %v598 = vrsqrt.pop %v563
        %v599 = vmul.f32 %v598, %v563
        %v600 = vmul.f32 %v599, %v598
        %v601 = vmul.f32 0.5, %v600
        %v602 = vsub.f32 1.5, %v601
        %v603 = vmul.f32 %v598, %v602
        %vm604 = vweird.f32 %v563
        %vm605 = vweird.f32 %v598
        %vm606 = vmor %vm604, %vm605
        %v607 = vsel %vm606, %v598, %v603
        %v608 = vrsqrt.pop %v564
        %v609 = vmul.f32 %v608, %v564
        %v610 = vmul.f32 %v609, %v608
        %v611 = vmul.f32 0.5, %v610
        %v612 = vsub.f32 1.5, %v611
        %v613 = vmul.f32 %v608, %v612
        %vm614 = vweird.f32 %v564
        %vm615 = vweird.f32 %v608
        %vm616 = vmor %vm614, %vm615
        %v617 = vsel %vm616, %v608, %v613
        %v618 = vrsqrt.pop %v565
        %v619 = vmul.f32 %v618, %v565
        %v620 = vmul.f32 %v619, %v618
        %v621 = vmul.f32 0.5, %v620
        %v622 = vsub.f32 1.5, %v621
        %v623 = vmul.f32 %v618, %v622
        %vm624 = vweird.f32 %v565
        %vm625 = vweird.f32 %v618
        %vm626 = vmor %vm624, %vm625
        %v627 = vsel %vm626, %v618, %v623
        %v628 = vrsqrt.pop %v566
        %v629 = vmul.f32 %v628, %v566
        %v630 = vmul.f32 %v629, %v628
        %v631 = vmul.f32 0.5, %v630
        %v632 = vsub.f32 1.5, %v631
        %v633 = vmul.f32 %v628, %v632
        %vm634 = vweird.f32 %v566
        %vm635 = vweird.f32 %v628
        %vm636 = vmor %vm634, %vm635
        %v637 = vsel %vm636, %v628, %v633
        %v638 = vrsqrt.pop %v567
        %v639 = vmul.f32 %v638, %v567
        %v640 = vmul.f32 %v639, %v638
        %v641 = vmul.f32 0.5, %v640
        %v642 = vsub.f32 1.5, %v641
        %v643 = vmul.f32 %v638, %v642
        %vm644 = vweird.f32 %v567
        %vm645 = vweird.f32 %v638
        %vm646 = vmor %vm644, %vm645
        %v647 = vsel %vm646, %v638, %v643
        %v648 = vmul.f32 %v136, %v577
        %v649 = vmul.f32 %v137, %v577
        %v650 = vmul.f32 %v138, %v577
        %v651 = vmul.f32 %v139, %v577
        %v652 = vmul.f32 %v140, %v577
        %v653 = vmul.f32 %v141, %v577
        %v654 = vmul.f32 %v142, %v577
        %v655 = vmul.f32 %v143, %v577
        %v656 = vmul.f32 %v144, %v577
        %v657 = vmul.f32 %v145, %v577
        %v658 = vmul.f32 %v146, %v577
        %v659 = vmul.f32 %v147, %v577
        %v660 = vmul.f32 %v148, %v577
        %v661 = vmul.f32 %v149, %v577
        %v662 = vmul.f32 %v150, %v577
        %v663 = vmul.f32 %v151, %v577
        %v664 = vmul.f32 %v152, %v587
        %v665 = vmul.f32 %v153, %v587
        %v666 = vmul.f32 %v154, %v587
        %v667 = vmul.f32 %v155, %v587
        %v668 = vmul.f32 %v156, %v587
        %v669 = vmul.f32 %v157, %v587
        %v670 = vmul.f32 %v158, %v587
        %v671 = vmul.f32 %v159, %v587
        %v672 = vmul.f32 %v160, %v587
        %v673 = vmul.f32 %v161, %v587
        %v674 = vmul.f32 %v162, %v587
        %v675 = vmul.f32 %v163, %v587
        %v676 = vmul.f32 %v164, %v587
        %v677 = vmul.f32 %v165, %v587
        %v678 = vmul.f32 %v166, %v587
        %v679 = vmul.f32 %v167, %v587
        %v680 = vmul.f32 %v168, %v597
        %v681 = vmul.f32 %v169, %v597
        %v682 = vmul.f32 %v170, %v597
        %v683 = vmul.f32 %v171, %v597
        %v684 = vmul.f32 %v172, %v597
        %v685 = vmul.f32 %v173, %v597
        %v686 = vmul.f32 %v174, %v597
        %v687 = vmul.f32 %v175, %v597
        %v688 = vmul.f32 %v176, %v597
        %v689 = vmul.f32 %v177, %v597
        %v690 = vmul.f32 %v178, %v597
        %v691 = vmul.f32 %v179, %v597
        %v692 = vmul.f32 %v180, %v597
        %v693 = vmul.f32 %v181, %v597
        %v694 = vmul.f32 %v182, %v597
        %v695 = vmul.f32 %v183, %v597
        %v696 = vmul.f32 %v184, %v607
        %v697 = vmul.f32 %v185, %v607
        %v698 = vmul.f32 %v186, %v607
        %v699 = vmul.f32 %v187, %v607
        %v700 = vmul.f32 %v188, %v607
        %v701 = vmul.f32 %v189, %v607
        %v702 = vmul.f32 %v190, %v607
        %v703 = vmul.f32 %v191, %v607
        %v704 = vmul.f32 %v192, %v607
        %v705 = vmul.f32 %v193, %v607
        %v706 = vmul.f32 %v194, %v607
        %v707 = vmul.f32 %v195, %v607
        %v708 = vmul.f32 %v196, %v607
        %v709 = vmul.f32 %v197, %v607
        %v710 = vmul.f32 %v198, %v607
        %v711 = vmul.f32 %v199, %v607
        %v712 = vmul.f32 %v200, %v617
        %v713 = vmul.f32 %v201, %v617
        %v714 = vmul.f32 %v202, %v617
        %v715 = vmul.f32 %v203, %v617
        %v716 = vmul.f32 %v204, %v617
        %v717 = vmul.f32 %v205, %v617
        %v718 = vmul.f32 %v206, %v617
        %v719 = vmul.f32 %v207, %v617
        %v720 = vmul.f32 %v208, %v617
        %v721 = vmul.f32 %v209, %v617
        %v722 = vmul.f32 %v210, %v617
        %v723 = vmul.f32 %v211, %v617
        %v724 = vmul.f32 %v212, %v617
        %v725 = vmul.f32 %v213, %v617
        %v726 = vmul.f32 %v214, %v617
        %v727 = vmul.f32 %v215, %v617
        %v728 = vmul.f32 %v216, %v627
        %v729 = vmul.f32 %v217, %v627
        %v730 = vmul.f32 %v218, %v627
        %v731 = vmul.f32 %v219, %v627
        %v732 = vmul.f32 %v220, %v627
        %v733 = vmul.f32 %v221, %v627
        %v734 = vmul.f32 %v222, %v627
        %v735 = vmul.f32 %v223, %v627
        %v736 = vmul.f32 %v224, %v627
        %v737 = vmul.f32 %v225, %v627
        %v738 = vmul.f32 %v226, %v627
        %v739 = vmul.f32 %v227, %v627
        %v740 = vmul.f32 %v228, %v627
        %v741 = vmul.f32 %v229, %v627
        %v742 = vmul.f32 %v230, %v627
        %v743 = vmul.f32 %v231, %v627
        %v744 = vmul.f32 %v232, %v637
        %v745 = vmul.f32 %v233, %v637
        %v746 = vmul.f32 %v234, %v637
        %v747 = vmul.f32 %v235, %v637
        %v748 = vmul.f32 %v236, %v637
        %v749 = vmul.f32 %v237, %v637
        %v750 = vmul.f32 %v238, %v637
        %v751 = vmul.f32 %v239, %v637
        %v752 = vmul.f32 %v240, %v637
        %v753 = vmul.f32 %v241, %v637
        %v754 = vmul.f32 %v242, %v637
        %v755 = vmul.f32 %v243, %v637
        %v756 = vmul.f32 %v244, %v637
        %v757 = vmul.f32 %v245, %v637
        %v758 = vmul.f32 %v246, %v637
        %v759 = vmul.f32 %v247, %v637
        %v760 = vmul.f32 %v248, %v647
        %v761 = vmul.f32 %v249, %v647
        %v762 = vmul.f32 %v250, %v647
        %v763 = vmul.f32 %v251, %v647
        %v764 = vmul.f32 %v252, %v647
        %v765 = vmul.f32 %v253, %v647
        %v766 = vmul.f32 %v254, %v647
        %v767 = vmul.f32 %v255, %v647
        %v768 = vmul.f32 %v256, %v647
        %v769 = vmul.f32 %v257, %v647
        %v770 = vmul.f32 %v258, %v647
        %v771 = vmul.f32 %v259, %v647
        %v772 = vmul.f32 %v260, %v647
        %v773 = vmul.f32 %v261, %v647
        %v774 = vmul.f32 %v262, %v647
        %v775 = vmul.f32 %v263, %v647
        %v776 = vmul.f32 %v648, %v648
        %v777 = vmul.f32 %v649, %v649
        %v778 = vmul.f32 %v650, %v650
        %v779 = vmul.f32 %v651, %v651
        %v780 = vmul.f32 %v652, %v652
        %v781 = vmul.f32 %v653, %v653
        %v782 = vmul.f32 %v654, %v654
        %v783 = vmul.f32 %v655, %v655
        %v784 = vmul.f32 %v656, %v656
        %v785 = vmul.f32 %v657, %v657
        %v786 = vmul.f32 %v658, %v658
        %v787 = vmul.f32 %v659, %v659
        %v788 = vmul.f32 %v660, %v660
        %v789 = vmul.f32 %v661, %v661
        %v790 = vmul.f32 %v662, %v662
        %v791 = vmul.f32 %v663, %v663
        %v792 = vmul.f32 %v664, %v648
        %v793 = vmul.f32 %v665, %v649
        %v794 = vmul.f32 %v666, %v650
        %v795 = vmul.f32 %v667, %v651
        %v796 = vmul.f32 %v668, %v652
        %v797 = vmul.f32 %v669, %v653
        %v798 = vmul.f32 %v670, %v654
        %v799 = vmul.f32 %v671, %v655
        %v800 = vmul.f32 %v672, %v656
        %v801 = vmul.f32 %v673, %v657
        %v802 = vmul.f32 %v674, %v658
        %v803 = vmul.f32 %v675, %v659
        %v804 = vmul.f32 %v676, %v660
        %v805 = vmul.f32 %v677, %v661
        %v806 = vmul.f32 %v678, %v662
        %v807 = vmul.f32 %v679, %v663
        %v808 = vmul.f32 %v680, %v648
        %v809 = vmul.f32 %v681, %v649
        %v810 = vmul.f32 %v682, %v650
        %v811 = vmul.f32 %v683, %v651
        %v812 = vmul.f32 %v684, %v652
        %v813 = vmul.f32 %v685, %v653
        %v814 = vmul.f32 %v686, %v654
        %v815 = vmul.f32 %v687, %v655
        %v816 = vmul.f32 %v688, %v656
        %v817 = vmul.f32 %v689, %v657
        %v818 = vmul.f32 %v690, %v658
        %v819 = vmul.f32 %v691, %v659
        %v820 = vmul.f32 %v692, %v660
        %v821 = vmul.f32 %v693, %v661
        %v822 = vmul.f32 %v694, %v662
        %v823 = vmul.f32 %v695, %v663
        %v824 = vmul.f32 %v696, %v648
        %v825 = vmul.f32 %v697, %v649
        %v826 = vmul.f32 %v698, %v650
        %v827 = vmul.f32 %v699, %v651
        %v828 = vmul.f32 %v700, %v652
        %v829 = vmul.f32 %v701, %v653
        %v830 = vmul.f32 %v702, %v654
        %v831 = vmul.f32 %v703, %v655
        %v832 = vmul.f32 %v704, %v656
        %v833 = vmul.f32 %v705, %v657
        %v834 = vmul.f32 %v706, %v658
        %v835 = vmul.f32 %v707, %v659
        %v836 = vmul.f32 %v708, %v660
        %v837 = vmul.f32 %v709, %v661
        %v838 = vmul.f32 %v710, %v662
        %v839 = vmul.f32 %v711, %v663
        %v840 = vmul.f32 %v712, %v648
        %v841 = vmul.f32 %v713, %v649
        %v842 = vmul.f32 %v714, %v650
        %v843 = vmul.f32 %v715, %v651
        %v844 = vmul.f32 %v716, %v652
        %v845 = vmul.f32 %v717, %v653
        %v846 = vmul.f32 %v718, %v654
        %v847 = vmul.f32 %v719, %v655
        %v848 = vmul.f32 %v720, %v656
        %v849 = vmul.f32 %v721, %v657
        %v850 = vmul.f32 %v722, %v658
        %v851 = vmul.f32 %v723, %v659
        %v852 = vmul.f32 %v724, %v660
        %v853 = vmul.f32 %v725, %v661
        %v854 = vmul.f32 %v726, %v662
        %v855 = vmul.f32 %v727, %v663
        %v856 = vmul.f32 %v728, %v648
        %v857 = vmul.f32 %v729, %v649
        %v858 = vmul.f32 %v730, %v650
        %v859 = vmul.f32 %v731, %v651
        %v860 = vmul.f32 %v732, %v652
        %v861 = vmul.f32 %v733, %v653
        %v862 = vmul.f32 %v734, %v654
        %v863 = vmul.f32 %v735, %v655
        %v864 = vmul.f32 %v736, %v656
        %v865 = vmul.f32 %v737, %v657
        %v866 = vmul.f32 %v738, %v658
        %v867 = vmul.f32 %v739, %v659
        %v868 = vmul.f32 %v740, %v660
        %v869 = vmul.f32 %v741, %v661
        %v870 = vmul.f32 %v742, %v662
        %v871 = vmul.f32 %v743, %v663
        %v872 = vmul.f32 %v744, %v648
        %v873 = vmul.f32 %v745, %v649
        %v874 = vmul.f32 %v746, %v650
        %v875 = vmul.f32 %v747, %v651
        %v876 = vmul.f32 %v748, %v652
        %v877 = vmul.f32 %v749, %v653
        %v878 = vmul.f32 %v750, %v654
        %v879 = vmul.f32 %v751, %v655
        %v880 = vmul.f32 %v752, %v656
        %v881 = vmul.f32 %v753, %v657
        %v882 = vmul.f32 %v754, %v658
        %v883 = vmul.f32 %v755, %v659
        %v884 = vmul.f32 %v756, %v660
        %v885 = vmul.f32 %v757, %v661
        %v886 = vmul.f32 %v758, %v662
        %v887 = vmul.f32 %v759, %v663
        %v888 = vmul.f32 %v760, %v648
        %v889 = vmul.f32 %v761, %v649
        %v890 = vmul.f32 %v762, %v650
        %v891 = vmul.f32 %v763, %v651
        %v892 = vmul.f32 %v764, %v652
        %v893 = vmul.f32 %v765, %v653
        %v894 = vmul.f32 %v766, %v654
        %v895 = vmul.f32 %v767, %v655
        %v896 = vmul.f32 %v768, %v656
        %v897 = vmul.f32 %v769, %v657
        %v898 = vmul.f32 %v770, %v658
        %v899 = vmul.f32 %v771, %v659
        %v900 = vmul.f32 %v772, %v660
        %v901 = vmul.f32 %v773, %v661
        %v902 = vmul.f32 %v774, %v662
        %v903 = vmul.f32 %v775, %v663
        %v904 = vadd.f32 %v776, %v777
        %v905 = vadd.f32 %v904, %v778
        %v906 = vadd.f32 %v905, %v779
        %v907 = vadd.f32 %v906, %v780
        %v908 = vadd.f32 %v907, %v781
        %v909 = vadd.f32 %v908, %v782
        %v910 = vadd.f32 %v909, %v783
        %v911 = vadd.f32 %v910, %v784
        %v912 = vadd.f32 %v911, %v785
        %v913 = vadd.f32 %v912, %v786
        %v914 = vadd.f32 %v913, %v787
        %v915 = vadd.f32 %v914, %v788
        %v916 = vadd.f32 %v915, %v789
        %v917 = vadd.f32 %v916, %v790
        %v918 = vadd.f32 %v917, %v791
        %v919 = vrot.slane %v918, 4
        %v920 = vadd.f32 %v918, %v919
        %v921 = vrot.slane %v920, 2
        %v922 = vadd.f32 %v920, %v921
        %v923 = vrot.slane %v922, 1
        %v924 = vadd.f32 %v922, %v923
        %v925 = vadd.f32 %v792, %v793
        %v926 = vadd.f32 %v925, %v794
        %v927 = vadd.f32 %v926, %v795
        %v928 = vadd.f32 %v927, %v796
        %v929 = vadd.f32 %v928, %v797
        %v930 = vadd.f32 %v929, %v798
        %v931 = vadd.f32 %v930, %v799
        %v932 = vadd.f32 %v931, %v800
        %v933 = vadd.f32 %v932, %v801
        %v934 = vadd.f32 %v933, %v802
        %v935 = vadd.f32 %v934, %v803
        %v936 = vadd.f32 %v935, %v804
        %v937 = vadd.f32 %v936, %v805
        %v938 = vadd.f32 %v937, %v806
        %v939 = vadd.f32 %v938, %v807
        %v940 = vrot.slane %v939, 4
        %v941 = vadd.f32 %v939, %v940
        %v942 = vrot.slane %v941, 2
        %v943 = vadd.f32 %v941, %v942
        %v944 = vrot.slane %v943, 1
        %v945 = vadd.f32 %v943, %v944
        %v946 = vadd.f32 %v808, %v809
        %v947 = vadd.f32 %v946, %v810
        %v948 = vadd.f32 %v947, %v811
        %v949 = vadd.f32 %v948, %v812
        %v950 = vadd.f32 %v949, %v813
        %v951 = vadd.f32 %v950, %v814
        %v952 = vadd.f32 %v951, %v815
        %v953 = vadd.f32 %v952, %v816
        %v954 = vadd.f32 %v953, %v817
        %v955 = vadd.f32 %v954, %v818
        %v956 = vadd.f32 %v955, %v819
        %v957 = vadd.f32 %v956, %v820
        %v958 = vadd.f32 %v957, %v821
        %v959 = vadd.f32 %v958, %v822
        %v960 = vadd.f32 %v959, %v823
        %v961 = vrot.slane %v960, 4
        %v962 = vadd.f32 %v960, %v961
        %v963 = vrot.slane %v962, 2
        %v964 = vadd.f32 %v962, %v963
        %v965 = vrot.slane %v964, 1
        %v966 = vadd.f32 %v964, %v965
        %v967 = vadd.f32 %v824, %v825
        %v968 = vadd.f32 %v967, %v826
        %v969 = vadd.f32 %v968, %v827
        %v970 = vadd.f32 %v969, %v828
        %v971 = vadd.f32 %v970, %v829
        %v972 = vadd.f32 %v971, %v830
        %v973 = vadd.f32 %v972, %v831
        %v974 = vadd.f32 %v973, %v832
        %v975 = vadd.f32 %v974, %v833
        %v976 = vadd.f32 %v975, %v834
        %v977 = vadd.f32 %v976, %v835
        %v978 = vadd.f32 %v977, %v836
        %v979 = vadd.f32 %v978, %v837
        %v980 = vadd.f32 %v979, %v838
        %v981 = vadd.f32 %v980, %v839
        %v982 = vrot.slane %v981, 4
        %v983 = vadd.f32 %v981, %v982
        %v984 = vrot.slane %v983, 2
        %v985 = vadd.f32 %v983, %v984
        %v986 = vrot.slane %v985, 1
        %v987 = vadd.f32 %v985, %v986
        %v988 = vadd.f32 %v840, %v841
        %v989 = vadd.f32 %v988, %v842
        %v990 = vadd.f32 %v989, %v843
        %v991 = vadd.f32 %v990, %v844
        %v992 = vadd.f32 %v991, %v845
        %v993 = vadd.f32 %v992, %v846
        %v994 = vadd.f32 %v993, %v847
        %v995 = vadd.f32 %v994, %v848
        %v996 = vadd.f32 %v995, %v849
        %v997 = vadd.f32 %v996, %v850
        %v998 = vadd.f32 %v997, %v851
        %v999 = vadd.f32 %v998, %v852
        %v1000 = vadd.f32 %v999, %v853
        %v1001 = vadd.f32 %v1000, %v854
        %v1002 = vadd.f32 %v1001, %v855
        %v1003 = vrot.slane %v1002, 4
        %v1004 = vadd.f32 %v1002, %v1003
        %v1005 = vrot.slane %v1004, 2
        %v1006 = vadd.f32 %v1004, %v1005
        %v1007 = vrot.slane %v1006, 1
        %v1008 = vadd.f32 %v1006, %v1007
        %v1009 = vadd.f32 %v856, %v857
        %v1010 = vadd.f32 %v1009, %v858
        %v1011 = vadd.f32 %v1010, %v859
        %v1012 = vadd.f32 %v1011, %v860
        %v1013 = vadd.f32 %v1012, %v861
        %v1014 = vadd.f32 %v1013, %v862
        %v1015 = vadd.f32 %v1014, %v863
        %v1016 = vadd.f32 %v1015, %v864
        %v1017 = vadd.f32 %v1016, %v865
        %v1018 = vadd.f32 %v1017, %v866
        %v1019 = vadd.f32 %v1018, %v867
        %v1020 = vadd.f32 %v1019, %v868
        %v1021 = vadd.f32 %v1020, %v869
        %v1022 = vadd.f32 %v1021, %v870
        %v1023 = vadd.f32 %v1022, %v871
        %v1024 = vrot.slane %v1023, 4
        %v1025 = vadd.f32 %v1023, %v1024
        %v1026 = vrot.slane %v1025, 2
        %v1027 = vadd.f32 %v1025, %v1026
        %v1028 = vrot.slane %v1027, 1
        %v1029 = vadd.f32 %v1027, %v1028
        %v1030 = vadd.f32 %v872, %v873
        %v1031 = vadd.f32 %v1030, %v874
        %v1032 = vadd.f32 %v1031, %v875
        %v1033 = vadd.f32 %v1032, %v876
        %v1034 = vadd.f32 %v1033, %v877
        %v1035 = vadd.f32 %v1034, %v878
        %v1036 = vadd.f32 %v1035, %v879
        %v1037 = vadd.f32 %v1036, %v880
        %v1038 = vadd.f32 %v1037, %v881
        %v1039 = vadd.f32 %v1038, %v882
        %v1040 = vadd.f32 %v1039, %v883
        %v1041 = vadd.f32 %v1040, %v884
        %v1042 = vadd.f32 %v1041, %v885
        %v1043 = vadd.f32 %v1042, %v886
        %v1044 = vadd.f32 %v1043, %v887
        %v1045 = vrot.slane %v1044, 4
        %v1046 = vadd.f32 %v1044, %v1045
        %v1047 = vrot.slane %v1046, 2
        %v1048 = vadd.f32 %v1046, %v1047
        %v1049 = vrot.slane %v1048, 1
        %v1050 = vadd.f32 %v1048, %v1049
        %v1051 = vadd.f32 %v888, %v889
        %v1052 = vadd.f32 %v1051, %v890
        %v1053 = vadd.f32 %v1052, %v891
        %v1054 = vadd.f32 %v1053, %v892
        %v1055 = vadd.f32 %v1054, %v893
        %v1056 = vadd.f32 %v1055, %v894
        %v1057 = vadd.f32 %v1056, %v895
        %v1058 = vadd.f32 %v1057, %v896
        %v1059 = vadd.f32 %v1058, %v897
        %v1060 = vadd.f32 %v1059, %v898
        %v1061 = vadd.f32 %v1060, %v899
        %v1062 = vadd.f32 %v1061, %v900
        %v1063 = vadd.f32 %v1062, %v901
        %v1064 = vadd.f32 %v1063, %v902
        %v1065 = vadd.f32 %v1064, %v903
        %v1066 = vrot.slane %v1065, 4
        %v1067 = vadd.f32 %v1065, %v1066
        %v1068 = vrot.slane %v1067, 2
        %v1069 = vadd.f32 %v1067, %v1068
        %v1070 = vrot.slane %v1069, 1
        %v1071 = vadd.f32 %v1069, %v1070
        %v1072 = vmax.f32 %v924, %v1008
        %v1073 = vmax.f32 %v945, %v1029
        %v1074 = vmax.f32 %v966, %v1050
        %v1075 = vmax.f32 %v987, %v1071
        %v1076 = vmax.f32 %v1072, %v1073
        %v1077 = vmax.f32 %v1074, %v1075
        %v1078 = vmax.f32 %v1076, %v1077
        %v1079 = vsub.f32 %v924, %v1078
        %v1080 = vsub.f32 %v945, %v1078
        %v1081 = vsub.f32 %v966, %v1078
        %v1082 = vsub.f32 %v987, %v1078
        %v1083 = vsub.f32 %v1008, %v1078
        %v1084 = vsub.f32 %v1029, %v1078
        %v1085 = vsub.f32 %v1050, %v1078
        %v1086 = vsub.f32 %v1071, %v1078
        %v1087 = vmul.f32 %v1079, 1.442695
        %v1088 = vpow.pop %v1087
        %v1089 = vmul.f32 %v1080, 1.442695
        %v1090 = vpow.pop %v1089
        %v1091 = vmul.f32 %v1081, 1.442695
        %v1092 = vpow.pop %v1091
        %v1093 = vmul.f32 %v1082, 1.442695
        %v1094 = vpow.pop %v1093
        %v1095 = vmul.f32 %v1083, 1.442695
        %v1096 = vpow.pop %v1095
        %v1097 = vmul.f32 %v1084, 1.442695
        %v1098 = vpow.pop %v1097
        %v1099 = vmul.f32 %v1085, 1.442695
        %v1100 = vpow.pop %v1099
        %v1101 = vmul.f32 %v1086, 1.442695
        %v1102 = vpow.pop %v1101
        %v1111 = vrot.slane %v1090, 7
        %vm1112 = vcmask 1041409
        %v1113 = vsel %vm1112, %v1111, %v1088
        %v1114 = vrot.slane %v1092, 6
        %vm1115 = vcmask 1042434
        %v1116 = vsel %vm1115, %v1114, %v1113
        %v1117 = vrot.slane %v1094, 5
        %vm1118 = vcmask 1043459
        %v1119 = vsel %vm1118, %v1117, %v1116
        %v1120 = vrot.slane %v1096, 4
        %vm1121 = vcmask 1044484
        %v1122 = vsel %vm1121, %v1120, %v1119
        %v1123 = vrot.slane %v1098, 3
        %vm1124 = vcmask 1045509
        %v1125 = vsel %vm1124, %v1123, %v1122
        %v1126 = vrot.slane %v1100, 2
        %vm1127 = vcmask 1046534
        %v1128 = vsel %vm1127, %v1126, %v1125
        %v1129 = vrot.slane %v1102, 1
        %vm1130 = vcmask 1047559
        %v1131 = vsel %vm1130, %v1129, %v1128
        %v1133 = vrot.slane %v1131, 4
        %v1134 = vadd.f32 %v1131, %v1133
        %v1135 = vrot.slane %v1134, 2
        %v1136 = vadd.f32 %v1134, %v1135
        %v1137 = vrot.slane %v1136, 1
        %v1138 = vadd.f32 %v1136, %v1137
        %v1139 = vrcp.pop %v1138
        %v1140 = vperm.slane %v1139, 0
        %v1141 = vmul.f32 %v1088, %v1140
        %v1142 = vmul.f32 %v1090, %v1140
        %v1143 = vmul.f32 %v1092, %v1140
        %v1144 = vmul.f32 %v1094, %v1140
        %v1145 = vmul.f32 %v1096, %v1140
        %v1146 = vmul.f32 %v1098, %v1140
        %v1147 = vmul.f32 %v1100, %v1140
        %v1148 = vmul.f32 %v1102, %v1140
        %v1157 = vrot.slane %v1142, 7
        %v1158 = vsel %vm1112, %v1157, %v1141
        %v1159 = vrot.slane %v1143, 6
        %v1160 = vsel %vm1115, %v1159, %v1158
        %v1161 = vrot.slane %v1144, 5
        %v1162 = vsel %vm1118, %v1161, %v1160
        %v1163 = vrot.slane %v1145, 4
        %v1164 = vsel %vm1121, %v1163, %v1162
        %v1165 = vrot.slane %v1146, 3
        %v1166 = vsel %vm1124, %v1165, %v1164
        %v1167 = vrot.slane %v1147, 2
        %v1168 = vsel %vm1127, %v1167, %v1166
        %v1169 = vrot.slane %v1148, 1
        %v1170 = vsel %vm1130, %v1169, %v1168
        %1172 = vst [vmem:[%s135] sm:$0xff] %v1170
        %v1173 = vmul.f32 %v664, %v664
        %v1174 = vmul.f32 %v665, %v665
        %v1175 = vmul.f32 %v666, %v666
        %v1176 = vmul.f32 %v667, %v667
        %v1177 = vmul.f32 %v668, %v668
        %v1178 = vmul.f32 %v669, %v669
        %v1179 = vmul.f32 %v670, %v670
        %v1180 = vmul.f32 %v671, %v671
        %v1181 = vmul.f32 %v672, %v672
        %v1182 = vmul.f32 %v673, %v673
        %v1183 = vmul.f32 %v674, %v674
        %v1184 = vmul.f32 %v675, %v675
        %v1185 = vmul.f32 %v676, %v676
        %v1186 = vmul.f32 %v677, %v677
        %v1187 = vmul.f32 %v678, %v678
        %v1188 = vmul.f32 %v679, %v679
        %v1189 = vmul.f32 %v680, %v664
        %v1190 = vmul.f32 %v681, %v665
        %v1191 = vmul.f32 %v682, %v666
        %v1192 = vmul.f32 %v683, %v667
        %v1193 = vmul.f32 %v684, %v668
        %v1194 = vmul.f32 %v685, %v669
        %v1195 = vmul.f32 %v686, %v670
        %v1196 = vmul.f32 %v687, %v671
        %v1197 = vmul.f32 %v688, %v672
        %v1198 = vmul.f32 %v689, %v673
        %v1199 = vmul.f32 %v690, %v674
        %v1200 = vmul.f32 %v691, %v675
        %v1201 = vmul.f32 %v692, %v676
        %v1202 = vmul.f32 %v693, %v677
        %v1203 = vmul.f32 %v694, %v678
        %v1204 = vmul.f32 %v695, %v679
        %v1205 = vmul.f32 %v696, %v664
        %v1206 = vmul.f32 %v697, %v665
        %v1207 = vmul.f32 %v698, %v666
        %v1208 = vmul.f32 %v699, %v667
        %v1209 = vmul.f32 %v700, %v668
        %v1210 = vmul.f32 %v701, %v669
        %v1211 = vmul.f32 %v702, %v670
        %v1212 = vmul.f32 %v703, %v671
        %v1213 = vmul.f32 %v704, %v672
        %v1214 = vmul.f32 %v705, %v673
        %v1215 = vmul.f32 %v706, %v674
        %v1216 = vmul.f32 %v707, %v675
        %v1217 = vmul.f32 %v708, %v676
        %v1218 = vmul.f32 %v709, %v677
        %v1219 = vmul.f32 %v710, %v678
        %v1220 = vmul.f32 %v711, %v679
        %v1221 = vmul.f32 %v712, %v664
        %v1222 = vmul.f32 %v713, %v665
        %v1223 = vmul.f32 %v714, %v666
        %v1224 = vmul.f32 %v715, %v667
        %v1225 = vmul.f32 %v716, %v668
        %v1226 = vmul.f32 %v717, %v669
        %v1227 = vmul.f32 %v718, %v670
        %v1228 = vmul.f32 %v719, %v671
        %v1229 = vmul.f32 %v720, %v672
        %v1230 = vmul.f32 %v721, %v673
        %v1231 = vmul.f32 %v722, %v674
        %v1232 = vmul.f32 %v723, %v675
        %v1233 = vmul.f32 %v724, %v676
        %v1234 = vmul.f32 %v725, %v677
        %v1235 = vmul.f32 %v726, %v678
        %v1236 = vmul.f32 %v727, %v679
        %v1237 = vmul.f32 %v728, %v664
        %v1238 = vmul.f32 %v729, %v665
        %v1239 = vmul.f32 %v730, %v666
        %v1240 = vmul.f32 %v731, %v667
        %v1241 = vmul.f32 %v732, %v668
        %v1242 = vmul.f32 %v733, %v669
        %v1243 = vmul.f32 %v734, %v670
        %v1244 = vmul.f32 %v735, %v671
        %v1245 = vmul.f32 %v736, %v672
        %v1246 = vmul.f32 %v737, %v673
        %v1247 = vmul.f32 %v738, %v674
        %v1248 = vmul.f32 %v739, %v675
        %v1249 = vmul.f32 %v740, %v676
        %v1250 = vmul.f32 %v741, %v677
        %v1251 = vmul.f32 %v742, %v678
        %v1252 = vmul.f32 %v743, %v679
        %v1253 = vmul.f32 %v744, %v664
        %v1254 = vmul.f32 %v745, %v665
        %v1255 = vmul.f32 %v746, %v666
        %v1256 = vmul.f32 %v747, %v667
        %v1257 = vmul.f32 %v748, %v668
        %v1258 = vmul.f32 %v749, %v669
        %v1259 = vmul.f32 %v750, %v670
        %v1260 = vmul.f32 %v751, %v671
        %v1261 = vmul.f32 %v752, %v672
        %v1262 = vmul.f32 %v753, %v673
        %v1263 = vmul.f32 %v754, %v674
        %v1264 = vmul.f32 %v755, %v675
        %v1265 = vmul.f32 %v756, %v676
        %v1266 = vmul.f32 %v757, %v677
        %v1267 = vmul.f32 %v758, %v678
        %v1268 = vmul.f32 %v759, %v679
        %v1269 = vmul.f32 %v760, %v664
        %v1270 = vmul.f32 %v761, %v665
        %v1271 = vmul.f32 %v762, %v666
        %v1272 = vmul.f32 %v763, %v667
        %v1273 = vmul.f32 %v764, %v668
        %v1274 = vmul.f32 %v765, %v669
        %v1275 = vmul.f32 %v766, %v670
        %v1276 = vmul.f32 %v767, %v671
        %v1277 = vmul.f32 %v768, %v672
        %v1278 = vmul.f32 %v769, %v673
        %v1279 = vmul.f32 %v770, %v674
        %v1280 = vmul.f32 %v771, %v675
        %v1281 = vmul.f32 %v772, %v676
        %v1282 = vmul.f32 %v773, %v677
        %v1283 = vmul.f32 %v774, %v678
        %v1284 = vmul.f32 %v775, %v679
        %v1285 = vadd.f32 %v1173, %v1174
        %v1286 = vadd.f32 %v1285, %v1175
        %v1287 = vadd.f32 %v1286, %v1176
        %v1288 = vadd.f32 %v1287, %v1177
        %v1289 = vadd.f32 %v1288, %v1178
        %v1290 = vadd.f32 %v1289, %v1179
        %v1291 = vadd.f32 %v1290, %v1180
        %v1292 = vadd.f32 %v1291, %v1181
        %v1293 = vadd.f32 %v1292, %v1182
        %v1294 = vadd.f32 %v1293, %v1183
        %v1295 = vadd.f32 %v1294, %v1184
        %v1296 = vadd.f32 %v1295, %v1185
        %v1297 = vadd.f32 %v1296, %v1186
        %v1298 = vadd.f32 %v1297, %v1187
        %v1299 = vadd.f32 %v1298, %v1188
        %v1300 = vrot.slane %v1299, 4
        %v1301 = vadd.f32 %v1299, %v1300
        %v1302 = vrot.slane %v1301, 2
        %v1303 = vadd.f32 %v1301, %v1302
        %v1304 = vrot.slane %v1303, 1
        %v1305 = vadd.f32 %v1303, %v1304
        %v1306 = vadd.f32 %v1189, %v1190
        %v1307 = vadd.f32 %v1306, %v1191
        %v1308 = vadd.f32 %v1307, %v1192
        %v1309 = vadd.f32 %v1308, %v1193
        %v1310 = vadd.f32 %v1309, %v1194
        %v1311 = vadd.f32 %v1310, %v1195
        %v1312 = vadd.f32 %v1311, %v1196
        %v1313 = vadd.f32 %v1312, %v1197
        %v1314 = vadd.f32 %v1313, %v1198
        %v1315 = vadd.f32 %v1314, %v1199
        %v1316 = vadd.f32 %v1315, %v1200
        %v1317 = vadd.f32 %v1316, %v1201
        %v1318 = vadd.f32 %v1317, %v1202
        %v1319 = vadd.f32 %v1318, %v1203
        %v1320 = vadd.f32 %v1319, %v1204
        %v1321 = vrot.slane %v1320, 4
        %v1322 = vadd.f32 %v1320, %v1321
        %v1323 = vrot.slane %v1322, 2
        %v1324 = vadd.f32 %v1322, %v1323
        %v1325 = vrot.slane %v1324, 1
        %v1326 = vadd.f32 %v1324, %v1325
        %v1327 = vadd.f32 %v1205, %v1206
        %v1328 = vadd.f32 %v1327, %v1207
        %v1329 = vadd.f32 %v1328, %v1208
        %v1330 = vadd.f32 %v1329, %v1209
        %v1331 = vadd.f32 %v1330, %v1210
        %v1332 = vadd.f32 %v1331, %v1211
        %v1333 = vadd.f32 %v1332, %v1212
        %v1334 = vadd.f32 %v1333, %v1213
        %v1335 = vadd.f32 %v1334, %v1214
        %v1336 = vadd.f32 %v1335, %v1215
        %v1337 = vadd.f32 %v1336, %v1216
        %v1338 = vadd.f32 %v1337, %v1217
        %v1339 = vadd.f32 %v1338, %v1218
        %v1340 = vadd.f32 %v1339, %v1219
        %v1341 = vadd.f32 %v1340, %v1220
        %v1342 = vrot.slane %v1341, 4
        %v1343 = vadd.f32 %v1341, %v1342
        %v1344 = vrot.slane %v1343, 2
        %v1345 = vadd.f32 %v1343, %v1344
        %v1346 = vrot.slane %v1345, 1
        %v1347 = vadd.f32 %v1345, %v1346
        %v1348 = vadd.f32 %v1221, %v1222
        %v1349 = vadd.f32 %v1348, %v1223
        %v1350 = vadd.f32 %v1349, %v1224
        %v1351 = vadd.f32 %v1350, %v1225
        %v1352 = vadd.f32 %v1351, %v1226
        %v1353 = vadd.f32 %v1352, %v1227
        %v1354 = vadd.f32 %v1353, %v1228
        %v1355 = vadd.f32 %v1354, %v1229
        %v1356 = vadd.f32 %v1355, %v1230
        %v1357 = vadd.f32 %v1356, %v1231
        %v1358 = vadd.f32 %v1357, %v1232
        %v1359 = vadd.f32 %v1358, %v1233
        %v1360 = vadd.f32 %v1359, %v1234
        %v1361 = vadd.f32 %v1360, %v1235
        %v1362 = vadd.f32 %v1361, %v1236
        %v1363 = vrot.slane %v1362, 4
        %v1364 = vadd.f32 %v1362, %v1363
        %v1365 = vrot.slane %v1364, 2
        %v1366 = vadd.f32 %v1364, %v1365
        %v1367 = vrot.slane %v1366, 1
        %v1368 = vadd.f32 %v1366, %v1367
        %v1369 = vadd.f32 %v1237, %v1238
        %v1370 = vadd.f32 %v1369, %v1239
        %v1371 = vadd.f32 %v1370, %v1240
        %v1372 = vadd.f32 %v1371, %v1241
        %v1373 = vadd.f32 %v1372, %v1242
        %v1374 = vadd.f32 %v1373, %v1243
        %v1375 = vadd.f32 %v1374, %v1244
        %v1376 = vadd.f32 %v1375, %v1245
        %v1377 = vadd.f32 %v1376, %v1246
        %v1378 = vadd.f32 %v1377, %v1247
        %v1379 = vadd.f32 %v1378, %v1248
        %v1380 = vadd.f32 %v1379, %v1249
        %v1381 = vadd.f32 %v1380, %v1250
        %v1382 = vadd.f32 %v1381, %v1251
        %v1383 = vadd.f32 %v1382, %v1252
        %v1384 = vrot.slane %v1383, 4
        %v1385 = vadd.f32 %v1383, %v1384
        %v1386 = vrot.slane %v1385, 2
        %v1387 = vadd.f32 %v1385, %v1386
        %v1388 = vrot.slane %v1387, 1
        %v1389 = vadd.f32 %v1387, %v1388
        %v1390 = vadd.f32 %v1253, %v1254
        %v1391 = vadd.f32 %v1390, %v1255
        %v1392 = vadd.f32 %v1391, %v1256
        %v1393 = vadd.f32 %v1392, %v1257
        %v1394 = vadd.f32 %v1393, %v1258
        %v1395 = vadd.f32 %v1394, %v1259
        %v1396 = vadd.f32 %v1395, %v1260
        %v1397 = vadd.f32 %v1396, %v1261
        %v1398 = vadd.f32 %v1397, %v1262
        %v1399 = vadd.f32 %v1398, %v1263
        %v1400 = vadd.f32 %v1399, %v1264
        %v1401 = vadd.f32 %v1400, %v1265
        %v1402 = vadd.f32 %v1401, %v1266
        %v1403 = vadd.f32 %v1402, %v1267
        %v1404 = vadd.f32 %v1403, %v1268
        %v1405 = vrot.slane %v1404, 4
        %v1406 = vadd.f32 %v1404, %v1405
        %v1407 = vrot.slane %v1406, 2
        %v1408 = vadd.f32 %v1406, %v1407
        %v1409 = vrot.slane %v1408, 1
        %v1410 = vadd.f32 %v1408, %v1409
        %v1411 = vadd.f32 %v1269, %v1270
        %v1412 = vadd.f32 %v1411, %v1271
        %v1413 = vadd.f32 %v1412, %v1272
        %v1414 = vadd.f32 %v1413, %v1273
        %v1415 = vadd.f32 %v1414, %v1274
        %v1416 = vadd.f32 %v1415, %v1275
        %v1417 = vadd.f32 %v1416, %v1276
        %v1418 = vadd.f32 %v1417, %v1277
        %v1419 = vadd.f32 %v1418, %v1278
        %v1420 = vadd.f32 %v1419, %v1279
        %v1421 = vadd.f32 %v1420, %v1280
        %v1422 = vadd.f32 %v1421, %v1281
        %v1423 = vadd.f32 %v1422, %v1282
        %v1424 = vadd.f32 %v1423, %v1283
        %v1425 = vadd.f32 %v1424, %v1284
        %v1426 = vrot.slane %v1425, 4
        %v1427 = vadd.f32 %v1425, %v1426
        %v1428 = vrot.slane %v1427, 2
        %v1429 = vadd.f32 %v1427, %v1428
        %v1430 = vrot.slane %v1429, 1
        %v1431 = vadd.f32 %v1429, %v1430
        %v1432 = vmax.f32 %v945, %v1368
        %v1433 = vmax.f32 %v1305, %v1389
        %v1434 = vmax.f32 %v1326, %v1410
        %v1435 = vmax.f32 %v1347, %v1431
        %v1436 = vmax.f32 %v1432, %v1433
        %v1437 = vmax.f32 %v1434, %v1435
        %v1438 = vmax.f32 %v1436, %v1437
        %v1439 = vsub.f32 %v945, %v1438
        %v1440 = vsub.f32 %v1305, %v1438
        %v1441 = vsub.f32 %v1326, %v1438
        %v1442 = vsub.f32 %v1347, %v1438
        %v1443 = vsub.f32 %v1368, %v1438
        %v1444 = vsub.f32 %v1389, %v1438
        %v1445 = vsub.f32 %v1410, %v1438
        %v1446 = vsub.f32 %v1431, %v1438
        %v1447 = vmul.f32 %v1439, 1.442695
        %v1448 = vpow.pop %v1447
        %v1449 = vmul.f32 %v1440, 1.442695
        %v1450 = vpow.pop %v1449
        %v1451 = vmul.f32 %v1441, 1.442695
        %v1452 = vpow.pop %v1451
        %v1453 = vmul.f32 %v1442, 1.442695
        %v1454 = vpow.pop %v1453
        %v1455 = vmul.f32 %v1443, 1.442695
        %v1456 = vpow.pop %v1455
        %v1457 = vmul.f32 %v1444, 1.442695
        %v1458 = vpow.pop %v1457
        %v1459 = vmul.f32 %v1445, 1.442695
        %v1460 = vpow.pop %v1459
        %v1461 = vmul.f32 %v1446, 1.442695
        %v1462 = vpow.pop %v1461
        %v1471 = vrot.slane %v1450, 7
        %v1472 = vsel %vm1112, %v1471, %v1448
        %v1473 = vrot.slane %v1452, 6
        %v1474 = vsel %vm1115, %v1473, %v1472
        %v1475 = vrot.slane %v1454, 5
        %v1476 = vsel %vm1118, %v1475, %v1474
        %v1477 = vrot.slane %v1456, 4
        %v1478 = vsel %vm1121, %v1477, %v1476
        %v1479 = vrot.slane %v1458, 3
        %v1480 = vsel %vm1124, %v1479, %v1478
        %v1481 = vrot.slane %v1460, 2
        %v1482 = vsel %vm1127, %v1481, %v1480
        %v1483 = vrot.slane %v1462, 1
        %v1484 = vsel %vm1130, %v1483, %v1482
        %v1486 = vrot.slane %v1484, 4
        %v1487 = vadd.f32 %v1484, %v1486
        %v1488 = vrot.slane %v1487, 2
        %v1489 = vadd.f32 %v1487, %v1488
        %v1490 = vrot.slane %v1489, 1
        %v1491 = vadd.f32 %v1489, %v1490
        %v1492 = vrcp.pop %v1491
        %v1493 = vperm.slane %v1492, 0
        %v1494 = vmul.f32 %v1448, %v1493
        %v1495 = vmul.f32 %v1450, %v1493
        %v1496 = vmul.f32 %v1452, %v1493
        %v1497 = vmul.f32 %v1454, %v1493
        %v1498 = vmul.f32 %v1456, %v1493
        %v1499 = vmul.f32 %v1458, %v1493
        %v1500 = vmul.f32 %v1460, %v1493
        %v1501 = vmul.f32 %v1462, %v1493
        %v1510 = vrot.slane %v1495, 7
        %v1511 = vsel %vm1112, %v1510, %v1494
        %v1512 = vrot.slane %v1496, 6
        %v1513 = vsel %vm1115, %v1512, %v1511
        %v1514 = vrot.slane %v1497, 5
        %v1515 = vsel %vm1118, %v1514, %v1513
        %v1516 = vrot.slane %v1498, 4
        %v1517 = vsel %vm1121, %v1516, %v1515
        %v1518 = vrot.slane %v1499, 3
        %v1519 = vsel %vm1124, %v1518, %v1517
        %v1520 = vrot.slane %v1500, 2
        %v1521 = vsel %vm1127, %v1520, %v1519
        %v1522 = vrot.slane %v1501, 1
        %v1523 = vsel %vm1130, %v1522, %v1521
        %s1525 = scalar_lea.vmem %s135, 8 [#allocation5]
        %1526 = vst [vmem:[%s1525] sm:$0xff] %v1523
        %v1527 = vmul.f32 %v680, %v680
        %v1528 = vmul.f32 %v681, %v681
        %v1529 = vmul.f32 %v682, %v682
        %v1530 = vmul.f32 %v683, %v683
        %v1531 = vmul.f32 %v684, %v684
        %v1532 = vmul.f32 %v685, %v685
        %v1533 = vmul.f32 %v686, %v686
        %v1534 = vmul.f32 %v687, %v687
        %v1535 = vmul.f32 %v688, %v688
        %v1536 = vmul.f32 %v689, %v689
        %v1537 = vmul.f32 %v690, %v690
        %v1538 = vmul.f32 %v691, %v691
        %v1539 = vmul.f32 %v692, %v692
        %v1540 = vmul.f32 %v693, %v693
        %v1541 = vmul.f32 %v694, %v694
        %v1542 = vmul.f32 %v695, %v695
        %v1543 = vmul.f32 %v696, %v680
        %v1544 = vmul.f32 %v697, %v681
        %v1545 = vmul.f32 %v698, %v682
        %v1546 = vmul.f32 %v699, %v683
        %v1547 = vmul.f32 %v700, %v684
        %v1548 = vmul.f32 %v701, %v685
        %v1549 = vmul.f32 %v702, %v686
        %v1550 = vmul.f32 %v703, %v687
        %v1551 = vmul.f32 %v704, %v688
        %v1552 = vmul.f32 %v705, %v689
        %v1553 = vmul.f32 %v706, %v690
        %v1554 = vmul.f32 %v707, %v691
        %v1555 = vmul.f32 %v708, %v692
        %v1556 = vmul.f32 %v709, %v693
        %v1557 = vmul.f32 %v710, %v694
        %v1558 = vmul.f32 %v711, %v695
        %v1559 = vmul.f32 %v712, %v680
        %v1560 = vmul.f32 %v713, %v681
        %v1561 = vmul.f32 %v714, %v682
        %v1562 = vmul.f32 %v715, %v683
        %v1563 = vmul.f32 %v716, %v684
        %v1564 = vmul.f32 %v717, %v685
        %v1565 = vmul.f32 %v718, %v686
        %v1566 = vmul.f32 %v719, %v687
        %v1567 = vmul.f32 %v720, %v688
        %v1568 = vmul.f32 %v721, %v689
        %v1569 = vmul.f32 %v722, %v690
        %v1570 = vmul.f32 %v723, %v691
        %v1571 = vmul.f32 %v724, %v692
        %v1572 = vmul.f32 %v725, %v693
        %v1573 = vmul.f32 %v726, %v694
        %v1574 = vmul.f32 %v727, %v695
        %v1575 = vmul.f32 %v728, %v680
        %v1576 = vmul.f32 %v729, %v681
        %v1577 = vmul.f32 %v730, %v682
        %v1578 = vmul.f32 %v731, %v683
        %v1579 = vmul.f32 %v732, %v684
        %v1580 = vmul.f32 %v733, %v685
        %v1581 = vmul.f32 %v734, %v686
        %v1582 = vmul.f32 %v735, %v687
        %v1583 = vmul.f32 %v736, %v688
        %v1584 = vmul.f32 %v737, %v689
        %v1585 = vmul.f32 %v738, %v690
        %v1586 = vmul.f32 %v739, %v691
        %v1587 = vmul.f32 %v740, %v692
        %v1588 = vmul.f32 %v741, %v693
        %v1589 = vmul.f32 %v742, %v694
        %v1590 = vmul.f32 %v743, %v695
        %v1591 = vmul.f32 %v744, %v680
        %v1592 = vmul.f32 %v745, %v681
        %v1593 = vmul.f32 %v746, %v682
        %v1594 = vmul.f32 %v747, %v683
        %v1595 = vmul.f32 %v748, %v684
        %v1596 = vmul.f32 %v749, %v685
        %v1597 = vmul.f32 %v750, %v686
        %v1598 = vmul.f32 %v751, %v687
        %v1599 = vmul.f32 %v752, %v688
        %v1600 = vmul.f32 %v753, %v689
        %v1601 = vmul.f32 %v754, %v690
        %v1602 = vmul.f32 %v755, %v691
        %v1603 = vmul.f32 %v756, %v692
        %v1604 = vmul.f32 %v757, %v693
        %v1605 = vmul.f32 %v758, %v694
        %v1606 = vmul.f32 %v759, %v695
        %v1607 = vmul.f32 %v760, %v680
        %v1608 = vmul.f32 %v761, %v681
        %v1609 = vmul.f32 %v762, %v682
        %v1610 = vmul.f32 %v763, %v683
        %v1611 = vmul.f32 %v764, %v684
        %v1612 = vmul.f32 %v765, %v685
        %v1613 = vmul.f32 %v766, %v686
        %v1614 = vmul.f32 %v767, %v687
        %v1615 = vmul.f32 %v768, %v688
        %v1616 = vmul.f32 %v769, %v689
        %v1617 = vmul.f32 %v770, %v690
        %v1618 = vmul.f32 %v771, %v691
        %v1619 = vmul.f32 %v772, %v692
        %v1620 = vmul.f32 %v773, %v693
        %v1621 = vmul.f32 %v774, %v694
        %v1622 = vmul.f32 %v775, %v695
        %v1623 = vadd.f32 %v1527, %v1528
        %v1624 = vadd.f32 %v1623, %v1529
        %v1625 = vadd.f32 %v1624, %v1530
        %v1626 = vadd.f32 %v1625, %v1531
        %v1627 = vadd.f32 %v1626, %v1532
        %v1628 = vadd.f32 %v1627, %v1533
        %v1629 = vadd.f32 %v1628, %v1534
        %v1630 = vadd.f32 %v1629, %v1535
        %v1631 = vadd.f32 %v1630, %v1536
        %v1632 = vadd.f32 %v1631, %v1537
        %v1633 = vadd.f32 %v1632, %v1538
        %v1634 = vadd.f32 %v1633, %v1539
        %v1635 = vadd.f32 %v1634, %v1540
        %v1636 = vadd.f32 %v1635, %v1541
        %v1637 = vadd.f32 %v1636, %v1542
        %v1638 = vrot.slane %v1637, 4
        %v1639 = vadd.f32 %v1637, %v1638
        %v1640 = vrot.slane %v1639, 2
        %v1641 = vadd.f32 %v1639, %v1640
        %v1642 = vrot.slane %v1641, 1
        %v1643 = vadd.f32 %v1641, %v1642
        %v1644 = vadd.f32 %v1543, %v1544
        %v1645 = vadd.f32 %v1644, %v1545
        %v1646 = vadd.f32 %v1645, %v1546
        %v1647 = vadd.f32 %v1646, %v1547
        %v1648 = vadd.f32 %v1647, %v1548
        %v1649 = vadd.f32 %v1648, %v1549
        %v1650 = vadd.f32 %v1649, %v1550
        %v1651 = vadd.f32 %v1650, %v1551
        %v1652 = vadd.f32 %v1651, %v1552
        %v1653 = vadd.f32 %v1652, %v1553
        %v1654 = vadd.f32 %v1653, %v1554
        %v1655 = vadd.f32 %v1654, %v1555
        %v1656 = vadd.f32 %v1655, %v1556
        %v1657 = vadd.f32 %v1656, %v1557
        %v1658 = vadd.f32 %v1657, %v1558
        %v1659 = vrot.slane %v1658, 4
        %v1660 = vadd.f32 %v1658, %v1659
        %v1661 = vrot.slane %v1660, 2
        %v1662 = vadd.f32 %v1660, %v1661
        %v1663 = vrot.slane %v1662, 1
        %v1664 = vadd.f32 %v1662, %v1663
        %v1665 = vadd.f32 %v1559, %v1560
        %v1666 = vadd.f32 %v1665, %v1561
        %v1667 = vadd.f32 %v1666, %v1562
        %v1668 = vadd.f32 %v1667, %v1563
        %v1669 = vadd.f32 %v1668, %v1564
        %v1670 = vadd.f32 %v1669, %v1565
        %v1671 = vadd.f32 %v1670, %v1566
        %v1672 = vadd.f32 %v1671, %v1567
        %v1673 = vadd.f32 %v1672, %v1568
        %v1674 = vadd.f32 %v1673, %v1569
        %v1675 = vadd.f32 %v1674, %v1570
        %v1676 = vadd.f32 %v1675, %v1571
        %v1677 = vadd.f32 %v1676, %v1572
        %v1678 = vadd.f32 %v1677, %v1573
        %v1679 = vadd.f32 %v1678, %v1574
        %v1680 = vrot.slane %v1679, 4
        %v1681 = vadd.f32 %v1679, %v1680
        %v1682 = vrot.slane %v1681, 2
        %v1683 = vadd.f32 %v1681, %v1682
        %v1684 = vrot.slane %v1683, 1
        %v1685 = vadd.f32 %v1683, %v1684
        %v1686 = vadd.f32 %v1575, %v1576
        %v1687 = vadd.f32 %v1686, %v1577
        %v1688 = vadd.f32 %v1687, %v1578
        %v1689 = vadd.f32 %v1688, %v1579
        %v1690 = vadd.f32 %v1689, %v1580
        %v1691 = vadd.f32 %v1690, %v1581
        %v1692 = vadd.f32 %v1691, %v1582
        %v1693 = vadd.f32 %v1692, %v1583
        %v1694 = vadd.f32 %v1693, %v1584
        %v1695 = vadd.f32 %v1694, %v1585
        %v1696 = vadd.f32 %v1695, %v1586
        %v1697 = vadd.f32 %v1696, %v1587
        %v1698 = vadd.f32 %v1697, %v1588
        %v1699 = vadd.f32 %v1698, %v1589
        %v1700 = vadd.f32 %v1699, %v1590
        %v1701 = vrot.slane %v1700, 4
        %v1702 = vadd.f32 %v1700, %v1701
        %v1703 = vrot.slane %v1702, 2
        %v1704 = vadd.f32 %v1702, %v1703
        %v1705 = vrot.slane %v1704, 1
        %v1706 = vadd.f32 %v1704, %v1705
        %v1707 = vadd.f32 %v1591, %v1592
        %v1708 = vadd.f32 %v1707, %v1593
        %v1709 = vadd.f32 %v1708, %v1594
        %v1710 = vadd.f32 %v1709, %v1595
        %v1711 = vadd.f32 %v1710, %v1596
        %v1712 = vadd.f32 %v1711, %v1597
        %v1713 = vadd.f32 %v1712, %v1598
        %v1714 = vadd.f32 %v1713, %v1599
        %v1715 = vadd.f32 %v1714, %v1600
        %v1716 = vadd.f32 %v1715, %v1601
        %v1717 = vadd.f32 %v1716, %v1602
        %v1718 = vadd.f32 %v1717, %v1603
        %v1719 = vadd.f32 %v1718, %v1604
        %v1720 = vadd.f32 %v1719, %v1605
        %v1721 = vadd.f32 %v1720, %v1606
        %v1722 = vrot.slane %v1721, 4
        %v1723 = vadd.f32 %v1721, %v1722
        %v1724 = vrot.slane %v1723, 2
        %v1725 = vadd.f32 %v1723, %v1724
        %v1726 = vrot.slane %v1725, 1
        %v1727 = vadd.f32 %v1725, %v1726
        %v1728 = vadd.f32 %v1607, %v1608
        %v1729 = vadd.f32 %v1728, %v1609
        %v1730 = vadd.f32 %v1729, %v1610
        %v1731 = vadd.f32 %v1730, %v1611
        %v1732 = vadd.f32 %v1731, %v1612
        %v1733 = vadd.f32 %v1732, %v1613
        %v1734 = vadd.f32 %v1733, %v1614
        %v1735 = vadd.f32 %v1734, %v1615
        %v1736 = vadd.f32 %v1735, %v1616
        %v1737 = vadd.f32 %v1736, %v1617
        %v1738 = vadd.f32 %v1737, %v1618
        %v1739 = vadd.f32 %v1738, %v1619
        %v1740 = vadd.f32 %v1739, %v1620
        %v1741 = vadd.f32 %v1740, %v1621
        %v1742 = vadd.f32 %v1741, %v1622
        %v1743 = vrot.slane %v1742, 4
        %v1744 = vadd.f32 %v1742, %v1743
        %v1745 = vrot.slane %v1744, 2
        %v1746 = vadd.f32 %v1744, %v1745
        %v1747 = vrot.slane %v1746, 1
        %v1748 = vadd.f32 %v1746, %v1747
        %v1749 = vmax.f32 %v966, %v1685
        %v1750 = vmax.f32 %v1326, %v1706
        %v1751 = vmax.f32 %v1643, %v1727
        %v1752 = vmax.f32 %v1664, %v1748
        %v1753 = vmax.f32 %v1749, %v1750
        %v1754 = vmax.f32 %v1751, %v1752
        %v1755 = vmax.f32 %v1753, %v1754
        %v1756 = vsub.f32 %v966, %v1755
        %v1757 = vsub.f32 %v1326, %v1755
        %v1758 = vsub.f32 %v1643, %v1755
        %v1759 = vsub.f32 %v1664, %v1755
        %v1760 = vsub.f32 %v1685, %v1755
        %v1761 = vsub.f32 %v1706, %v1755
        %v1762 = vsub.f32 %v1727, %v1755
        %v1763 = vsub.f32 %v1748, %v1755
        %v1764 = vmul.f32 %v1756, 1.442695
        %v1765 = vpow.pop %v1764
        %v1766 = vmul.f32 %v1757, 1.442695
        %v1767 = vpow.pop %v1766
        %v1768 = vmul.f32 %v1758, 1.442695
        %v1769 = vpow.pop %v1768
        %v1770 = vmul.f32 %v1759, 1.442695
        %v1771 = vpow.pop %v1770
        %v1772 = vmul.f32 %v1760, 1.442695
        %v1773 = vpow.pop %v1772
        %v1774 = vmul.f32 %v1761, 1.442695
        %v1775 = vpow.pop %v1774
        %v1776 = vmul.f32 %v1762, 1.442695
        %v1777 = vpow.pop %v1776
        %v1778 = vmul.f32 %v1763, 1.442695
        %v1779 = vpow.pop %v1778
        %v1788 = vrot.slane %v1767, 7
        %v1789 = vsel %vm1112, %v1788, %v1765
        %v1790 = vrot.slane %v1769, 6
        %v1791 = vsel %vm1115, %v1790, %v1789
        %v1792 = vrot.slane %v1771, 5
        %v1793 = vsel %vm1118, %v1792, %v1791
        %v1794 = vrot.slane %v1773, 4
        %v1795 = vsel %vm1121, %v1794, %v1793
        %v1796 = vrot.slane %v1775, 3
        %v1797 = vsel %vm1124, %v1796, %v1795
        %v1798 = vrot.slane %v1777, 2
        %v1799 = vsel %vm1127, %v1798, %v1797
        %v1800 = vrot.slane %v1779, 1
        %v1801 = vsel %vm1130, %v1800, %v1799
        %v1803 = vrot.slane %v1801, 4
        %v1804 = vadd.f32 %v1801, %v1803
        %v1805 = vrot.slane %v1804, 2
        %v1806 = vadd.f32 %v1804, %v1805
        %v1807 = vrot.slane %v1806, 1
        %v1808 = vadd.f32 %v1806, %v1807
        %v1809 = vrcp.pop %v1808
        %v1810 = vperm.slane %v1809, 0
        %v1811 = vmul.f32 %v1765, %v1810
        %v1812 = vmul.f32 %v1767, %v1810
        %v1813 = vmul.f32 %v1769, %v1810
        %v1814 = vmul.f32 %v1771, %v1810
        %v1815 = vmul.f32 %v1773, %v1810
        %v1816 = vmul.f32 %v1775, %v1810
        %v1817 = vmul.f32 %v1777, %v1810
        %v1818 = vmul.f32 %v1779, %v1810
        %v1827 = vrot.slane %v1812, 7
        %v1828 = vsel %vm1112, %v1827, %v1811
        %v1829 = vrot.slane %v1813, 6
        %v1830 = vsel %vm1115, %v1829, %v1828
        %v1831 = vrot.slane %v1814, 5
        %v1832 = vsel %vm1118, %v1831, %v1830
        %v1833 = vrot.slane %v1815, 4
        %v1834 = vsel %vm1121, %v1833, %v1832
        %v1835 = vrot.slane %v1816, 3
        %v1836 = vsel %vm1124, %v1835, %v1834
        %v1837 = vrot.slane %v1817, 2
        %v1838 = vsel %vm1127, %v1837, %v1836
        %v1839 = vrot.slane %v1818, 1
        %v1840 = vsel %vm1130, %v1839, %v1838
        %s1842 = scalar_lea.vmem %s135, 16 [#allocation5]
        %1843 = vst [vmem:[%s1842] sm:$0xff] %v1840
        %v1844 = vmul.f32 %v696, %v696
        %v1845 = vmul.f32 %v697, %v697
        %v1846 = vmul.f32 %v698, %v698
        %v1847 = vmul.f32 %v699, %v699
        %v1848 = vmul.f32 %v700, %v700
        %v1849 = vmul.f32 %v701, %v701
        %v1850 = vmul.f32 %v702, %v702
        %v1851 = vmul.f32 %v703, %v703
        %v1852 = vmul.f32 %v704, %v704
        %v1853 = vmul.f32 %v705, %v705
        %v1854 = vmul.f32 %v706, %v706
        %v1855 = vmul.f32 %v707, %v707
        %v1856 = vmul.f32 %v708, %v708
        %v1857 = vmul.f32 %v709, %v709
        %v1858 = vmul.f32 %v710, %v710
        %v1859 = vmul.f32 %v711, %v711
        %v1860 = vmul.f32 %v712, %v696
        %v1861 = vmul.f32 %v713, %v697
        %v1862 = vmul.f32 %v714, %v698
        %v1863 = vmul.f32 %v715, %v699
        %v1864 = vmul.f32 %v716, %v700
        %v1865 = vmul.f32 %v717, %v701
        %v1866 = vmul.f32 %v718, %v702
        %v1867 = vmul.f32 %v719, %v703
        %v1868 = vmul.f32 %v720, %v704
        %v1869 = vmul.f32 %v721, %v705
        %v1870 = vmul.f32 %v722, %v706
        %v1871 = vmul.f32 %v723, %v707
        %v1872 = vmul.f32 %v724, %v708
        %v1873 = vmul.f32 %v725, %v709
        %v1874 = vmul.f32 %v726, %v710
        %v1875 = vmul.f32 %v727, %v711
        %v1876 = vmul.f32 %v728, %v696
        %v1877 = vmul.f32 %v729, %v697
        %v1878 = vmul.f32 %v730, %v698
        %v1879 = vmul.f32 %v731, %v699
        %v1880 = vmul.f32 %v732, %v700
        %v1881 = vmul.f32 %v733, %v701
        %v1882 = vmul.f32 %v734, %v702
        %v1883 = vmul.f32 %v735, %v703
        %v1884 = vmul.f32 %v736, %v704
        %v1885 = vmul.f32 %v737, %v705
        %v1886 = vmul.f32 %v738, %v706
        %v1887 = vmul.f32 %v739, %v707
        %v1888 = vmul.f32 %v740, %v708
        %v1889 = vmul.f32 %v741, %v709
        %v1890 = vmul.f32 %v742, %v710
        %v1891 = vmul.f32 %v743, %v711
        %v1892 = vmul.f32 %v744, %v696
        %v1893 = vmul.f32 %v745, %v697
        %v1894 = vmul.f32 %v746, %v698
        %v1895 = vmul.f32 %v747, %v699
        %v1896 = vmul.f32 %v748, %v700
        %v1897 = vmul.f32 %v749, %v701
        %v1898 = vmul.f32 %v750, %v702
        %v1899 = vmul.f32 %v751, %v703
        %v1900 = vmul.f32 %v752, %v704
        %v1901 = vmul.f32 %v753, %v705
        %v1902 = vmul.f32 %v754, %v706
        %v1903 = vmul.f32 %v755, %v707
        %v1904 = vmul.f32 %v756, %v708
        %v1905 = vmul.f32 %v757, %v709
        %v1906 = vmul.f32 %v758, %v710
        %v1907 = vmul.f32 %v759, %v711
        %v1908 = vmul.f32 %v760, %v696
        %v1909 = vmul.f32 %v761, %v697
        %v1910 = vmul.f32 %v762, %v698
        %v1911 = vmul.f32 %v763, %v699
        %v1912 = vmul.f32 %v764, %v700
        %v1913 = vmul.f32 %v765, %v701
        %v1914 = vmul.f32 %v766, %v702
        %v1915 = vmul.f32 %v767, %v703
        %v1916 = vmul.f32 %v768, %v704
        %v1917 = vmul.f32 %v769, %v705
        %v1918 = vmul.f32 %v770, %v706
        %v1919 = vmul.f32 %v771, %v707
        %v1920 = vmul.f32 %v772, %v708
        %v1921 = vmul.f32 %v773, %v709
        %v1922 = vmul.f32 %v774, %v710
        %v1923 = vmul.f32 %v775, %v711
        %v1924 = vadd.f32 %v1844, %v1845
        %v1925 = vadd.f32 %v1924, %v1846
        %v1926 = vadd.f32 %v1925, %v1847
        %v1927 = vadd.f32 %v1926, %v1848
        %v1928 = vadd.f32 %v1927, %v1849
        %v1929 = vadd.f32 %v1928, %v1850
        %v1930 = vadd.f32 %v1929, %v1851
        %v1931 = vadd.f32 %v1930, %v1852
        %v1932 = vadd.f32 %v1931, %v1853
        %v1933 = vadd.f32 %v1932, %v1854
        %v1934 = vadd.f32 %v1933, %v1855
        %v1935 = vadd.f32 %v1934, %v1856
        %v1936 = vadd.f32 %v1935, %v1857
        %v1937 = vadd.f32 %v1936, %v1858
        %v1938 = vadd.f32 %v1937, %v1859
        %v1939 = vrot.slane %v1938, 4
        %v1940 = vadd.f32 %v1938, %v1939
        %v1941 = vrot.slane %v1940, 2
        %v1942 = vadd.f32 %v1940, %v1941
        %v1943 = vrot.slane %v1942, 1
        %v1944 = vadd.f32 %v1942, %v1943
        %v1945 = vadd.f32 %v1860, %v1861
        %v1946 = vadd.f32 %v1945, %v1862
        %v1947 = vadd.f32 %v1946, %v1863
        %v1948 = vadd.f32 %v1947, %v1864
        %v1949 = vadd.f32 %v1948, %v1865
        %v1950 = vadd.f32 %v1949, %v1866
        %v1951 = vadd.f32 %v1950, %v1867
        %v1952 = vadd.f32 %v1951, %v1868
        %v1953 = vadd.f32 %v1952, %v1869
        %v1954 = vadd.f32 %v1953, %v1870
        %v1955 = vadd.f32 %v1954, %v1871
        %v1956 = vadd.f32 %v1955, %v1872
        %v1957 = vadd.f32 %v1956, %v1873
        %v1958 = vadd.f32 %v1957, %v1874
        %v1959 = vadd.f32 %v1958, %v1875
        %v1960 = vrot.slane %v1959, 4
        %v1961 = vadd.f32 %v1959, %v1960
        %v1962 = vrot.slane %v1961, 2
        %v1963 = vadd.f32 %v1961, %v1962
        %v1964 = vrot.slane %v1963, 1
        %v1965 = vadd.f32 %v1963, %v1964
        %v1966 = vadd.f32 %v1876, %v1877
        %v1967 = vadd.f32 %v1966, %v1878
        %v1968 = vadd.f32 %v1967, %v1879
        %v1969 = vadd.f32 %v1968, %v1880
        %v1970 = vadd.f32 %v1969, %v1881
        %v1971 = vadd.f32 %v1970, %v1882
        %v1972 = vadd.f32 %v1971, %v1883
        %v1973 = vadd.f32 %v1972, %v1884
        %v1974 = vadd.f32 %v1973, %v1885
        %v1975 = vadd.f32 %v1974, %v1886
        %v1976 = vadd.f32 %v1975, %v1887
        %v1977 = vadd.f32 %v1976, %v1888
        %v1978 = vadd.f32 %v1977, %v1889
        %v1979 = vadd.f32 %v1978, %v1890
        %v1980 = vadd.f32 %v1979, %v1891
        %v1981 = vrot.slane %v1980, 4
        %v1982 = vadd.f32 %v1980, %v1981
        %v1983 = vrot.slane %v1982, 2
        %v1984 = vadd.f32 %v1982, %v1983
        %v1985 = vrot.slane %v1984, 1
        %v1986 = vadd.f32 %v1984, %v1985
        %v1987 = vadd.f32 %v1892, %v1893
        %v1988 = vadd.f32 %v1987, %v1894
        %v1989 = vadd.f32 %v1988, %v1895
        %v1990 = vadd.f32 %v1989, %v1896
        %v1991 = vadd.f32 %v1990, %v1897
        %v1992 = vadd.f32 %v1991, %v1898
        %v1993 = vadd.f32 %v1992, %v1899
        %v1994 = vadd.f32 %v1993, %v1900
        %v1995 = vadd.f32 %v1994, %v1901
        %v1996 = vadd.f32 %v1995, %v1902
        %v1997 = vadd.f32 %v1996, %v1903
        %v1998 = vadd.f32 %v1997, %v1904
        %v1999 = vadd.f32 %v1998, %v1905
        %v2000 = vadd.f32 %v1999, %v1906
        %v2001 = vadd.f32 %v2000, %v1907
        %v2002 = vrot.slane %v2001, 4
        %v2003 = vadd.f32 %v2001, %v2002
        %v2004 = vrot.slane %v2003, 2
        %v2005 = vadd.f32 %v2003, %v2004
        %v2006 = vrot.slane %v2005, 1
        %v2007 = vadd.f32 %v2005, %v2006
        %v2008 = vadd.f32 %v1908, %v1909
        %v2009 = vadd.f32 %v2008, %v1910
        %v2010 = vadd.f32 %v2009, %v1911
        %v2011 = vadd.f32 %v2010, %v1912
        %v2012 = vadd.f32 %v2011, %v1913
        %v2013 = vadd.f32 %v2012, %v1914
        %v2014 = vadd.f32 %v2013, %v1915
        %v2015 = vadd.f32 %v2014, %v1916
        %v2016 = vadd.f32 %v2015, %v1917
        %v2017 = vadd.f32 %v2016, %v1918
        %v2018 = vadd.f32 %v2017, %v1919
        %v2019 = vadd.f32 %v2018, %v1920
        %v2020 = vadd.f32 %v2019, %v1921
        %v2021 = vadd.f32 %v2020, %v1922
        %v2022 = vadd.f32 %v2021, %v1923
        %v2023 = vrot.slane %v2022, 4
        %v2024 = vadd.f32 %v2022, %v2023
        %v2025 = vrot.slane %v2024, 2
        %v2026 = vadd.f32 %v2024, %v2025
        %v2027 = vrot.slane %v2026, 1
        %v2028 = vadd.f32 %v2026, %v2027
        %v2029 = vmax.f32 %v987, %v1965
        %v2030 = vmax.f32 %v1347, %v1986
        %v2031 = vmax.f32 %v1664, %v2007
        %v2032 = vmax.f32 %v1944, %v2028
        %v2033 = vmax.f32 %v2029, %v2030
        %v2034 = vmax.f32 %v2031, %v2032
        %v2035 = vmax.f32 %v2033, %v2034
        %v2036 = vsub.f32 %v987, %v2035
        %v2037 = vsub.f32 %v1347, %v2035
        %v2038 = vsub.f32 %v1664, %v2035
        %v2039 = vsub.f32 %v1944, %v2035
        %v2040 = vsub.f32 %v1965, %v2035
        %v2041 = vsub.f32 %v1986, %v2035
        %v2042 = vsub.f32 %v2007, %v2035
        %v2043 = vsub.f32 %v2028, %v2035
        %v2044 = vmul.f32 %v2036, 1.442695
        %v2045 = vpow.pop %v2044
        %v2046 = vmul.f32 %v2037, 1.442695
        %v2047 = vpow.pop %v2046
        %v2048 = vmul.f32 %v2038, 1.442695
        %v2049 = vpow.pop %v2048
        %v2050 = vmul.f32 %v2039, 1.442695
        %v2051 = vpow.pop %v2050
        %v2052 = vmul.f32 %v2040, 1.442695
        %v2053 = vpow.pop %v2052
        %v2054 = vmul.f32 %v2041, 1.442695
        %v2055 = vpow.pop %v2054
        %v2056 = vmul.f32 %v2042, 1.442695
        %v2057 = vpow.pop %v2056
        %v2058 = vmul.f32 %v2043, 1.442695
        %v2059 = vpow.pop %v2058
        %v2068 = vrot.slane %v2047, 7
        %v2069 = vsel %vm1112, %v2068, %v2045
        %v2070 = vrot.slane %v2049, 6
        %v2071 = vsel %vm1115, %v2070, %v2069
        %v2072 = vrot.slane %v2051, 5
        %v2073 = vsel %vm1118, %v2072, %v2071
        %v2074 = vrot.slane %v2053, 4
        %v2075 = vsel %vm1121, %v2074, %v2073
        %v2076 = vrot.slane %v2055, 3
        %v2077 = vsel %vm1124, %v2076, %v2075
        %v2078 = vrot.slane %v2057, 2
        %v2079 = vsel %vm1127, %v2078, %v2077
        %v2080 = vrot.slane %v2059, 1
        %v2081 = vsel %vm1130, %v2080, %v2079
        %v2083 = vrot.slane %v2081, 4
        %v2084 = vadd.f32 %v2081, %v2083
        %v2085 = vrot.slane %v2084, 2
        %v2086 = vadd.f32 %v2084, %v2085
        %v2087 = vrot.slane %v2086, 1
        %v2088 = vadd.f32 %v2086, %v2087
        %v2089 = vrcp.pop %v2088
        %v2090 = vperm.slane %v2089, 0
        %v2091 = vmul.f32 %v2045, %v2090
        %v2092 = vmul.f32 %v2047, %v2090
        %v2093 = vmul.f32 %v2049, %v2090
        %v2094 = vmul.f32 %v2051, %v2090
        %v2095 = vmul.f32 %v2053, %v2090
        %v2096 = vmul.f32 %v2055, %v2090
        %v2097 = vmul.f32 %v2057, %v2090
        %v2098 = vmul.f32 %v2059, %v2090
        %v2107 = vrot.slane %v2092, 7
        %v2108 = vsel %vm1112, %v2107, %v2091
        %v2109 = vrot.slane %v2093, 6
        %v2110 = vsel %vm1115, %v2109, %v2108
        %v2111 = vrot.slane %v2094, 5
        %v2112 = vsel %vm1118, %v2111, %v2110
        %v2113 = vrot.slane %v2095, 4
        %v2114 = vsel %vm1121, %v2113, %v2112
        %v2115 = vrot.slane %v2096, 3
        %v2116 = vsel %vm1124, %v2115, %v2114
        %v2117 = vrot.slane %v2097, 2
        %v2118 = vsel %vm1127, %v2117, %v2116
        %v2119 = vrot.slane %v2098, 1
        %v2120 = vsel %vm1130, %v2119, %v2118
        %s2122 = scalar_lea.vmem %s135, 24 [#allocation5]
        %2123 = vst [vmem:[%s2122] sm:$0xff] %v2120
        %v2124 = vmul.f32 %v712, %v712
        %v2125 = vmul.f32 %v713, %v713
        %v2126 = vmul.f32 %v714, %v714
        %v2127 = vmul.f32 %v715, %v715
        %v2128 = vmul.f32 %v716, %v716
        %v2129 = vmul.f32 %v717, %v717
        %v2130 = vmul.f32 %v718, %v718
        %v2131 = vmul.f32 %v719, %v719
        %v2132 = vmul.f32 %v720, %v720
        %v2133 = vmul.f32 %v721, %v721
        %v2134 = vmul.f32 %v722, %v722
        %v2135 = vmul.f32 %v723, %v723
        %v2136 = vmul.f32 %v724, %v724
        %v2137 = vmul.f32 %v725, %v725
        %v2138 = vmul.f32 %v726, %v726
        %v2139 = vmul.f32 %v727, %v727
        %v2140 = vmul.f32 %v728, %v712
        %v2141 = vmul.f32 %v729, %v713
        %v2142 = vmul.f32 %v730, %v714
        %v2143 = vmul.f32 %v731, %v715
        %v2144 = vmul.f32 %v732, %v716
        %v2145 = vmul.f32 %v733, %v717
        %v2146 = vmul.f32 %v734, %v718
        %v2147 = vmul.f32 %v735, %v719
        %v2148 = vmul.f32 %v736, %v720
        %v2149 = vmul.f32 %v737, %v721
        %v2150 = vmul.f32 %v738, %v722
        %v2151 = vmul.f32 %v739, %v723
        %v2152 = vmul.f32 %v740, %v724
        %v2153 = vmul.f32 %v741, %v725
        %v2154 = vmul.f32 %v742, %v726
        %v2155 = vmul.f32 %v743, %v727
        %v2156 = vmul.f32 %v744, %v712
        %v2157 = vmul.f32 %v745, %v713
        %v2158 = vmul.f32 %v746, %v714
        %v2159 = vmul.f32 %v747, %v715
        %v2160 = vmul.f32 %v748, %v716
        %v2161 = vmul.f32 %v749, %v717
        %v2162 = vmul.f32 %v750, %v718
        %v2163 = vmul.f32 %v751, %v719
        %v2164 = vmul.f32 %v752, %v720
        %v2165 = vmul.f32 %v753, %v721
        %v2166 = vmul.f32 %v754, %v722
        %v2167 = vmul.f32 %v755, %v723
        %v2168 = vmul.f32 %v756, %v724
        %v2169 = vmul.f32 %v757, %v725
        %v2170 = vmul.f32 %v758, %v726
        %v2171 = vmul.f32 %v759, %v727
        %v2172 = vmul.f32 %v760, %v712
        %v2173 = vmul.f32 %v761, %v713
        %v2174 = vmul.f32 %v762, %v714
        %v2175 = vmul.f32 %v763, %v715
        %v2176 = vmul.f32 %v764, %v716
        %v2177 = vmul.f32 %v765, %v717
        %v2178 = vmul.f32 %v766, %v718
        %v2179 = vmul.f32 %v767, %v719
        %v2180 = vmul.f32 %v768, %v720
        %v2181 = vmul.f32 %v769, %v721
        %v2182 = vmul.f32 %v770, %v722
        %v2183 = vmul.f32 %v771, %v723
        %v2184 = vmul.f32 %v772, %v724
        %v2185 = vmul.f32 %v773, %v725
        %v2186 = vmul.f32 %v774, %v726
        %v2187 = vmul.f32 %v775, %v727
        %v2188 = vadd.f32 %v2124, %v2125
        %v2189 = vadd.f32 %v2188, %v2126
        %v2190 = vadd.f32 %v2189, %v2127
        %v2191 = vadd.f32 %v2190, %v2128
        %v2192 = vadd.f32 %v2191, %v2129
        %v2193 = vadd.f32 %v2192, %v2130
        %v2194 = vadd.f32 %v2193, %v2131
        %v2195 = vadd.f32 %v2194, %v2132
        %v2196 = vadd.f32 %v2195, %v2133
        %v2197 = vadd.f32 %v2196, %v2134
        %v2198 = vadd.f32 %v2197, %v2135
        %v2199 = vadd.f32 %v2198, %v2136
        %v2200 = vadd.f32 %v2199, %v2137
        %v2201 = vadd.f32 %v2200, %v2138
        %v2202 = vadd.f32 %v2201, %v2139
        %v2203 = vrot.slane %v2202, 4
        %v2204 = vadd.f32 %v2202, %v2203
        %v2205 = vrot.slane %v2204, 2
        %v2206 = vadd.f32 %v2204, %v2205
        %v2207 = vrot.slane %v2206, 1
        %v2208 = vadd.f32 %v2206, %v2207
        %v2209 = vadd.f32 %v2140, %v2141
        %v2210 = vadd.f32 %v2209, %v2142
        %v2211 = vadd.f32 %v2210, %v2143
        %v2212 = vadd.f32 %v2211, %v2144
        %v2213 = vadd.f32 %v2212, %v2145
        %v2214 = vadd.f32 %v2213, %v2146
        %v2215 = vadd.f32 %v2214, %v2147
        %v2216 = vadd.f32 %v2215, %v2148
        %v2217 = vadd.f32 %v2216, %v2149
        %v2218 = vadd.f32 %v2217, %v2150
        %v2219 = vadd.f32 %v2218, %v2151
        %v2220 = vadd.f32 %v2219, %v2152
        %v2221 = vadd.f32 %v2220, %v2153
        %v2222 = vadd.f32 %v2221, %v2154
        %v2223 = vadd.f32 %v2222, %v2155
        %v2224 = vrot.slane %v2223, 4
        %v2225 = vadd.f32 %v2223, %v2224
        %v2226 = vrot.slane %v2225, 2
        %v2227 = vadd.f32 %v2225, %v2226
        %v2228 = vrot.slane %v2227, 1
        %v2229 = vadd.f32 %v2227, %v2228
        %v2230 = vadd.f32 %v2156, %v2157
        %v2231 = vadd.f32 %v2230, %v2158
        %v2232 = vadd.f32 %v2231, %v2159
        %v2233 = vadd.f32 %v2232, %v2160
        %v2234 = vadd.f32 %v2233, %v2161
        %v2235 = vadd.f32 %v2234, %v2162
        %v2236 = vadd.f32 %v2235, %v2163
        %v2237 = vadd.f32 %v2236, %v2164
        %v2238 = vadd.f32 %v2237, %v2165
        %v2239 = vadd.f32 %v2238, %v2166
        %v2240 = vadd.f32 %v2239, %v2167
        %v2241 = vadd.f32 %v2240, %v2168
        %v2242 = vadd.f32 %v2241, %v2169
        %v2243 = vadd.f32 %v2242, %v2170
        %v2244 = vadd.f32 %v2243, %v2171
        %v2245 = vrot.slane %v2244, 4
        %v2246 = vadd.f32 %v2244, %v2245
        %v2247 = vrot.slane %v2246, 2
        %v2248 = vadd.f32 %v2246, %v2247
        %v2249 = vrot.slane %v2248, 1
        %v2250 = vadd.f32 %v2248, %v2249
        %v2251 = vadd.f32 %v2172, %v2173
        %v2252 = vadd.f32 %v2251, %v2174
        %v2253 = vadd.f32 %v2252, %v2175
        %v2254 = vadd.f32 %v2253, %v2176
        %v2255 = vadd.f32 %v2254, %v2177
        %v2256 = vadd.f32 %v2255, %v2178
        %v2257 = vadd.f32 %v2256, %v2179
        %v2258 = vadd.f32 %v2257, %v2180
        %v2259 = vadd.f32 %v2258, %v2181
        %v2260 = vadd.f32 %v2259, %v2182
        %v2261 = vadd.f32 %v2260, %v2183
        %v2262 = vadd.f32 %v2261, %v2184
        %v2263 = vadd.f32 %v2262, %v2185
        %v2264 = vadd.f32 %v2263, %v2186
        %v2265 = vadd.f32 %v2264, %v2187
        %v2266 = vrot.slane %v2265, 4
        %v2267 = vadd.f32 %v2265, %v2266
        %v2268 = vrot.slane %v2267, 2
        %v2269 = vadd.f32 %v2267, %v2268
        %v2270 = vrot.slane %v2269, 1
        %v2271 = vadd.f32 %v2269, %v2270
        %v2272 = vmax.f32 %v1008, %v2208
        %v2273 = vmax.f32 %v1368, %v2229
        %v2274 = vmax.f32 %v1685, %v2250
        %v2275 = vmax.f32 %v1965, %v2271
        %v2276 = vmax.f32 %v2272, %v2273
        %v2277 = vmax.f32 %v2274, %v2275
        %v2278 = vmax.f32 %v2276, %v2277
        %v2279 = vsub.f32 %v1008, %v2278
        %v2280 = vsub.f32 %v1368, %v2278
        %v2281 = vsub.f32 %v1685, %v2278
        %v2282 = vsub.f32 %v1965, %v2278
        %v2283 = vsub.f32 %v2208, %v2278
        %v2284 = vsub.f32 %v2229, %v2278
        %v2285 = vsub.f32 %v2250, %v2278
        %v2286 = vsub.f32 %v2271, %v2278
        %v2287 = vmul.f32 %v2279, 1.442695
        %v2288 = vpow.pop %v2287
        %v2289 = vmul.f32 %v2280, 1.442695
        %v2290 = vpow.pop %v2289
        %v2291 = vmul.f32 %v2281, 1.442695
        %v2292 = vpow.pop %v2291
        %v2293 = vmul.f32 %v2282, 1.442695
        %v2294 = vpow.pop %v2293
        %v2295 = vmul.f32 %v2283, 1.442695
        %v2296 = vpow.pop %v2295
        %v2297 = vmul.f32 %v2284, 1.442695
        %v2298 = vpow.pop %v2297
        %v2299 = vmul.f32 %v2285, 1.442695
        %v2300 = vpow.pop %v2299
        %v2301 = vmul.f32 %v2286, 1.442695
        %v2302 = vpow.pop %v2301
        %v2311 = vrot.slane %v2290, 7
        %v2312 = vsel %vm1112, %v2311, %v2288
        %v2313 = vrot.slane %v2292, 6
        %v2314 = vsel %vm1115, %v2313, %v2312
        %v2315 = vrot.slane %v2294, 5
        %v2316 = vsel %vm1118, %v2315, %v2314
        %v2317 = vrot.slane %v2296, 4
        %v2318 = vsel %vm1121, %v2317, %v2316
        %v2319 = vrot.slane %v2298, 3
        %v2320 = vsel %vm1124, %v2319, %v2318
        %v2321 = vrot.slane %v2300, 2
        %v2322 = vsel %vm1127, %v2321, %v2320
        %v2323 = vrot.slane %v2302, 1
        %v2324 = vsel %vm1130, %v2323, %v2322
        %v2326 = vrot.slane %v2324, 4
        %v2327 = vadd.f32 %v2324, %v2326
        %v2328 = vrot.slane %v2327, 2
        %v2329 = vadd.f32 %v2327, %v2328
        %v2330 = vrot.slane %v2329, 1
        %v2331 = vadd.f32 %v2329, %v2330
        %v2332 = vrcp.pop %v2331
        %v2333 = vperm.slane %v2332, 0
        %v2334 = vmul.f32 %v2288, %v2333
        %v2335 = vmul.f32 %v2290, %v2333
        %v2336 = vmul.f32 %v2292, %v2333
        %v2337 = vmul.f32 %v2294, %v2333
        %v2338 = vmul.f32 %v2296, %v2333
        %v2339 = vmul.f32 %v2298, %v2333
        %v2340 = vmul.f32 %v2300, %v2333
        %v2341 = vmul.f32 %v2302, %v2333
        %v2350 = vrot.slane %v2335, 7
        %v2351 = vsel %vm1112, %v2350, %v2334
        %v2352 = vrot.slane %v2336, 6
        %v2353 = vsel %vm1115, %v2352, %v2351
        %v2354 = vrot.slane %v2337, 5
        %v2355 = vsel %vm1118, %v2354, %v2353
        %v2356 = vrot.slane %v2338, 4
        %v2357 = vsel %vm1121, %v2356, %v2355
        %v2358 = vrot.slane %v2339, 3
        %v2359 = vsel %vm1124, %v2358, %v2357
        %v2360 = vrot.slane %v2340, 2
        %v2361 = vsel %vm1127, %v2360, %v2359
        %v2362 = vrot.slane %v2341, 1
        %v2363 = vsel %vm1130, %v2362, %v2361
        %s2365 = scalar_lea.vmem %s135, 32 [#allocation5]
        %2366 = vst [vmem:[%s2365] sm:$0xff] %v2363
        %v2367 = vmul.f32 %v728, %v728
        %v2368 = vmul.f32 %v729, %v729
        %v2369 = vmul.f32 %v730, %v730
        %v2370 = vmul.f32 %v731, %v731
        %v2371 = vmul.f32 %v732, %v732
        %v2372 = vmul.f32 %v733, %v733
        %v2373 = vmul.f32 %v734, %v734
        %v2374 = vmul.f32 %v735, %v735
        %v2375 = vmul.f32 %v736, %v736
        %v2376 = vmul.f32 %v737, %v737
        %v2377 = vmul.f32 %v738, %v738
        %v2378 = vmul.f32 %v739, %v739
        %v2379 = vmul.f32 %v740, %v740
        %v2380 = vmul.f32 %v741, %v741
        %v2381 = vmul.f32 %v742, %v742
        %v2382 = vmul.f32 %v743, %v743
        %v2383 = vmul.f32 %v744, %v728
        %v2384 = vmul.f32 %v745, %v729
        %v2385 = vmul.f32 %v746, %v730
        %v2386 = vmul.f32 %v747, %v731
        %v2387 = vmul.f32 %v748, %v732
        %v2388 = vmul.f32 %v749, %v733
        %v2389 = vmul.f32 %v750, %v734
        %v2390 = vmul.f32 %v751, %v735
        %v2391 = vmul.f32 %v752, %v736
        %v2392 = vmul.f32 %v753, %v737
        %v2393 = vmul.f32 %v754, %v738
        %v2394 = vmul.f32 %v755, %v739
        %v2395 = vmul.f32 %v756, %v740
        %v2396 = vmul.f32 %v757, %v741
        %v2397 = vmul.f32 %v758, %v742
        %v2398 = vmul.f32 %v759, %v743
        %v2399 = vmul.f32 %v760, %v728
        %v2400 = vmul.f32 %v761, %v729
        %v2401 = vmul.f32 %v762, %v730
        %v2402 = vmul.f32 %v763, %v731
        %v2403 = vmul.f32 %v764, %v732
        %v2404 = vmul.f32 %v765, %v733
        %v2405 = vmul.f32 %v766, %v734
        %v2406 = vmul.f32 %v767, %v735
        %v2407 = vmul.f32 %v768, %v736
        %v2408 = vmul.f32 %v769, %v737
        %v2409 = vmul.f32 %v770, %v738
        %v2410 = vmul.f32 %v771, %v739
        %v2411 = vmul.f32 %v772, %v740
        %v2412 = vmul.f32 %v773, %v741
        %v2413 = vmul.f32 %v774, %v742
        %v2414 = vmul.f32 %v775, %v743
        %v2415 = vadd.f32 %v2367, %v2368
        %v2416 = vadd.f32 %v2415, %v2369
        %v2417 = vadd.f32 %v2416, %v2370
        %v2418 = vadd.f32 %v2417, %v2371
        %v2419 = vadd.f32 %v2418, %v2372
        %v2420 = vadd.f32 %v2419, %v2373
        %v2421 = vadd.f32 %v2420, %v2374
        %v2422 = vadd.f32 %v2421, %v2375
        %v2423 = vadd.f32 %v2422, %v2376
        %v2424 = vadd.f32 %v2423, %v2377
        %v2425 = vadd.f32 %v2424, %v2378
        %v2426 = vadd.f32 %v2425, %v2379
        %v2427 = vadd.f32 %v2426, %v2380
        %v2428 = vadd.f32 %v2427, %v2381
        %v2429 = vadd.f32 %v2428, %v2382
        %v2430 = vrot.slane %v2429, 4
        %v2431 = vadd.f32 %v2429, %v2430
        %v2432 = vrot.slane %v2431, 2
        %v2433 = vadd.f32 %v2431, %v2432
        %v2434 = vrot.slane %v2433, 1
        %v2435 = vadd.f32 %v2433, %v2434
        %v2436 = vadd.f32 %v2383, %v2384
        %v2437 = vadd.f32 %v2436, %v2385
        %v2438 = vadd.f32 %v2437, %v2386
        %v2439 = vadd.f32 %v2438, %v2387
        %v2440 = vadd.f32 %v2439, %v2388
        %v2441 = vadd.f32 %v2440, %v2389
        %v2442 = vadd.f32 %v2441, %v2390
        %v2443 = vadd.f32 %v2442, %v2391
        %v2444 = vadd.f32 %v2443, %v2392
        %v2445 = vadd.f32 %v2444, %v2393
        %v2446 = vadd.f32 %v2445, %v2394
        %v2447 = vadd.f32 %v2446, %v2395
        %v2448 = vadd.f32 %v2447, %v2396
        %v2449 = vadd.f32 %v2448, %v2397
        %v2450 = vadd.f32 %v2449, %v2398
        %v2451 = vrot.slane %v2450, 4
        %v2452 = vadd.f32 %v2450, %v2451
        %v2453 = vrot.slane %v2452, 2
        %v2454 = vadd.f32 %v2452, %v2453
        %v2455 = vrot.slane %v2454, 1
        %v2456 = vadd.f32 %v2454, %v2455
        %v2457 = vadd.f32 %v2399, %v2400
        %v2458 = vadd.f32 %v2457, %v2401
        %v2459 = vadd.f32 %v2458, %v2402
        %v2460 = vadd.f32 %v2459, %v2403
        %v2461 = vadd.f32 %v2460, %v2404
        %v2462 = vadd.f32 %v2461, %v2405
        %v2463 = vadd.f32 %v2462, %v2406
        %v2464 = vadd.f32 %v2463, %v2407
        %v2465 = vadd.f32 %v2464, %v2408
        %v2466 = vadd.f32 %v2465, %v2409
        %v2467 = vadd.f32 %v2466, %v2410
        %v2468 = vadd.f32 %v2467, %v2411
        %v2469 = vadd.f32 %v2468, %v2412
        %v2470 = vadd.f32 %v2469, %v2413
        %v2471 = vadd.f32 %v2470, %v2414
        %v2472 = vrot.slane %v2471, 4
        %v2473 = vadd.f32 %v2471, %v2472
        %v2474 = vrot.slane %v2473, 2
        %v2475 = vadd.f32 %v2473, %v2474
        %v2476 = vrot.slane %v2475, 1
        %v2477 = vadd.f32 %v2475, %v2476
        %v2478 = vmax.f32 %v1029, %v2229
        %v2479 = vmax.f32 %v1389, %v2435
        %v2480 = vmax.f32 %v1706, %v2456
        %v2481 = vmax.f32 %v1986, %v2477
        %v2482 = vmax.f32 %v2478, %v2479
        %v2483 = vmax.f32 %v2480, %v2481
        %v2484 = vmax.f32 %v2482, %v2483
        %v2485 = vsub.f32 %v1029, %v2484
        %v2486 = vsub.f32 %v1389, %v2484
        %v2487 = vsub.f32 %v1706, %v2484
        %v2488 = vsub.f32 %v1986, %v2484
        %v2489 = vsub.f32 %v2229, %v2484
        %v2490 = vsub.f32 %v2435, %v2484
        %v2491 = vsub.f32 %v2456, %v2484
        %v2492 = vsub.f32 %v2477, %v2484
        %v2493 = vmul.f32 %v2485, 1.442695
        %v2494 = vpow.pop %v2493
        %v2495 = vmul.f32 %v2486, 1.442695
        %v2496 = vpow.pop %v2495
        %v2497 = vmul.f32 %v2487, 1.442695
        %v2498 = vpow.pop %v2497
        %v2499 = vmul.f32 %v2488, 1.442695
        %v2500 = vpow.pop %v2499
        %v2501 = vmul.f32 %v2489, 1.442695
        %v2502 = vpow.pop %v2501
        %v2503 = vmul.f32 %v2490, 1.442695
        %v2504 = vpow.pop %v2503
        %v2505 = vmul.f32 %v2491, 1.442695
        %v2506 = vpow.pop %v2505
        %v2507 = vmul.f32 %v2492, 1.442695
        %v2508 = vpow.pop %v2507
        %v2517 = vrot.slane %v2496, 7
        %v2518 = vsel %vm1112, %v2517, %v2494
        %v2519 = vrot.slane %v2498, 6
        %v2520 = vsel %vm1115, %v2519, %v2518
        %v2521 = vrot.slane %v2500, 5
        %v2522 = vsel %vm1118, %v2521, %v2520
        %v2523 = vrot.slane %v2502, 4
        %v2524 = vsel %vm1121, %v2523, %v2522
        %v2525 = vrot.slane %v2504, 3
        %v2526 = vsel %vm1124, %v2525, %v2524
        %v2527 = vrot.slane %v2506, 2
        %v2528 = vsel %vm1127, %v2527, %v2526
        %v2529 = vrot.slane %v2508, 1
        %v2530 = vsel %vm1130, %v2529, %v2528
        %v2532 = vrot.slane %v2530, 4
        %v2533 = vadd.f32 %v2530, %v2532
        %v2534 = vrot.slane %v2533, 2
        %v2535 = vadd.f32 %v2533, %v2534
        %v2536 = vrot.slane %v2535, 1
        %v2537 = vadd.f32 %v2535, %v2536
        %v2538 = vrcp.pop %v2537
        %v2539 = vperm.slane %v2538, 0
        %v2540 = vmul.f32 %v2494, %v2539
        %v2541 = vmul.f32 %v2496, %v2539
        %v2542 = vmul.f32 %v2498, %v2539
        %v2543 = vmul.f32 %v2500, %v2539
        %v2544 = vmul.f32 %v2502, %v2539
        %v2545 = vmul.f32 %v2504, %v2539
        %v2546 = vmul.f32 %v2506, %v2539
        %v2547 = vmul.f32 %v2508, %v2539
        %v2556 = vrot.slane %v2541, 7
        %v2557 = vsel %vm1112, %v2556, %v2540
        %v2558 = vrot.slane %v2542, 6
        %v2559 = vsel %vm1115, %v2558, %v2557
        %v2560 = vrot.slane %v2543, 5
        %v2561 = vsel %vm1118, %v2560, %v2559
        %v2562 = vrot.slane %v2544, 4
        %v2563 = vsel %vm1121, %v2562, %v2561
        %v2564 = vrot.slane %v2545, 3
        %v2565 = vsel %vm1124, %v2564, %v2563
        %v2566 = vrot.slane %v2546, 2
        %v2567 = vsel %vm1127, %v2566, %v2565
        %v2568 = vrot.slane %v2547, 1
        %v2569 = vsel %vm1130, %v2568, %v2567
        %s2571 = scalar_lea.vmem %s135, 40 [#allocation5]
        %2572 = vst [vmem:[%s2571] sm:$0xff] %v2569
        %v2573 = vmul.f32 %v744, %v744
        %v2574 = vmul.f32 %v745, %v745
        %v2575 = vmul.f32 %v746, %v746
        %v2576 = vmul.f32 %v747, %v747
        %v2577 = vmul.f32 %v748, %v748
        %v2578 = vmul.f32 %v749, %v749
        %v2579 = vmul.f32 %v750, %v750
        %v2580 = vmul.f32 %v751, %v751
        %v2581 = vmul.f32 %v752, %v752
        %v2582 = vmul.f32 %v753, %v753
        %v2583 = vmul.f32 %v754, %v754
        %v2584 = vmul.f32 %v755, %v755
        %v2585 = vmul.f32 %v756, %v756
        %v2586 = vmul.f32 %v757, %v757
        %v2587 = vmul.f32 %v758, %v758
        %v2588 = vmul.f32 %v759, %v759
        %v2589 = vmul.f32 %v760, %v744
        %v2590 = vmul.f32 %v761, %v745
        %v2591 = vmul.f32 %v762, %v746
        %v2592 = vmul.f32 %v763, %v747
        %v2593 = vmul.f32 %v764, %v748
        %v2594 = vmul.f32 %v765, %v749
        %v2595 = vmul.f32 %v766, %v750
        %v2596 = vmul.f32 %v767, %v751
        %v2597 = vmul.f32 %v768, %v752
        %v2598 = vmul.f32 %v769, %v753
        %v2599 = vmul.f32 %v770, %v754
        %v2600 = vmul.f32 %v771, %v755
        %v2601 = vmul.f32 %v772, %v756
        %v2602 = vmul.f32 %v773, %v757
        %v2603 = vmul.f32 %v774, %v758
        %v2604 = vmul.f32 %v775, %v759
        %v2605 = vadd.f32 %v2573, %v2574
        %v2606 = vadd.f32 %v2605, %v2575
        %v2607 = vadd.f32 %v2606, %v2576
        %v2608 = vadd.f32 %v2607, %v2577
        %v2609 = vadd.f32 %v2608, %v2578
        %v2610 = vadd.f32 %v2609, %v2579
        %v2611 = vadd.f32 %v2610, %v2580
        %v2612 = vadd.f32 %v2611, %v2581
        %v2613 = vadd.f32 %v2612, %v2582
        %v2614 = vadd.f32 %v2613, %v2583
        %v2615 = vadd.f32 %v2614, %v2584
        %v2616 = vadd.f32 %v2615, %v2585
        %v2617 = vadd.f32 %v2616, %v2586
        %v2618 = vadd.f32 %v2617, %v2587
        %v2619 = vadd.f32 %v2618, %v2588
        %v2620 = vrot.slane %v2619, 4
        %v2621 = vadd.f32 %v2619, %v2620
        %v2622 = vrot.slane %v2621, 2
        %v2623 = vadd.f32 %v2621, %v2622
        %v2624 = vrot.slane %v2623, 1
        %v2625 = vadd.f32 %v2623, %v2624
        %v2626 = vadd.f32 %v2589, %v2590
        %v2627 = vadd.f32 %v2626, %v2591
        %v2628 = vadd.f32 %v2627, %v2592
        %v2629 = vadd.f32 %v2628, %v2593
        %v2630 = vadd.f32 %v2629, %v2594
        %v2631 = vadd.f32 %v2630, %v2595
        %v2632 = vadd.f32 %v2631, %v2596
        %v2633 = vadd.f32 %v2632, %v2597
        %v2634 = vadd.f32 %v2633, %v2598
        %v2635 = vadd.f32 %v2634, %v2599
        %v2636 = vadd.f32 %v2635, %v2600
        %v2637 = vadd.f32 %v2636, %v2601
        %v2638 = vadd.f32 %v2637, %v2602
        %v2639 = vadd.f32 %v2638, %v2603
        %v2640 = vadd.f32 %v2639, %v2604
        %v2641 = vrot.slane %v2640, 4
        %v2642 = vadd.f32 %v2640, %v2641
        %v2643 = vrot.slane %v2642, 2
        %v2644 = vadd.f32 %v2642, %v2643
        %v2645 = vrot.slane %v2644, 1
        %v2646 = vadd.f32 %v2644, %v2645
        %v2647 = vmax.f32 %v1050, %v2250
        %v2648 = vmax.f32 %v1410, %v2456
        %v2649 = vmax.f32 %v1727, %v2625
        %v2650 = vmax.f32 %v2007, %v2646
        %v2651 = vmax.f32 %v2647, %v2648
        %v2652 = vmax.f32 %v2649, %v2650
        %v2653 = vmax.f32 %v2651, %v2652
        %v2654 = vsub.f32 %v1050, %v2653
        %v2655 = vsub.f32 %v1410, %v2653
        %v2656 = vsub.f32 %v1727, %v2653
        %v2657 = vsub.f32 %v2007, %v2653
        %v2658 = vsub.f32 %v2250, %v2653
        %v2659 = vsub.f32 %v2456, %v2653
        %v2660 = vsub.f32 %v2625, %v2653
        %v2661 = vsub.f32 %v2646, %v2653
        %v2662 = vmul.f32 %v2654, 1.442695
        %v2663 = vpow.pop %v2662
        %v2664 = vmul.f32 %v2655, 1.442695
        %v2665 = vpow.pop %v2664
        %v2666 = vmul.f32 %v2656, 1.442695
        %v2667 = vpow.pop %v2666
        %v2668 = vmul.f32 %v2657, 1.442695
        %v2669 = vpow.pop %v2668
        %v2670 = vmul.f32 %v2658, 1.442695
        %v2671 = vpow.pop %v2670
        %v2672 = vmul.f32 %v2659, 1.442695
        %v2673 = vpow.pop %v2672
        %v2674 = vmul.f32 %v2660, 1.442695
        %v2675 = vpow.pop %v2674
        %v2676 = vmul.f32 %v2661, 1.442695
        %v2677 = vpow.pop %v2676
        %v2686 = vrot.slane %v2665, 7
        %v2687 = vsel %vm1112, %v2686, %v2663
        %v2688 = vrot.slane %v2667, 6
        %v2689 = vsel %vm1115, %v2688, %v2687
        %v2690 = vrot.slane %v2669, 5
        %v2691 = vsel %vm1118, %v2690, %v2689
        %v2692 = vrot.slane %v2671, 4
        %v2693 = vsel %vm1121, %v2692, %v2691
        %v2694 = vrot.slane %v2673, 3
        %v2695 = vsel %vm1124, %v2694, %v2693
        %v2696 = vrot.slane %v2675, 2
        %v2697 = vsel %vm1127, %v2696, %v2695
        %v2698 = vrot.slane %v2677, 1
        %v2699 = vsel %vm1130, %v2698, %v2697
        %v2701 = vrot.slane %v2699, 4
        %v2702 = vadd.f32 %v2699, %v2701
        %v2703 = vrot.slane %v2702, 2
        %v2704 = vadd.f32 %v2702, %v2703
        %v2705 = vrot.slane %v2704, 1
        %v2706 = vadd.f32 %v2704, %v2705
        %v2707 = vrcp.pop %v2706
        %v2708 = vperm.slane %v2707, 0
        %v2709 = vmul.f32 %v2663, %v2708
        %v2710 = vmul.f32 %v2665, %v2708
        %v2711 = vmul.f32 %v2667, %v2708
        %v2712 = vmul.f32 %v2669, %v2708
        %v2713 = vmul.f32 %v2671, %v2708
        %v2714 = vmul.f32 %v2673, %v2708
        %v2715 = vmul.f32 %v2675, %v2708
        %v2716 = vmul.f32 %v2677, %v2708
        %v2725 = vrot.slane %v2710, 7
        %v2726 = vsel %vm1112, %v2725, %v2709
        %v2727 = vrot.slane %v2711, 6
        %v2728 = vsel %vm1115, %v2727, %v2726
        %v2729 = vrot.slane %v2712, 5
        %v2730 = vsel %vm1118, %v2729, %v2728
        %v2731 = vrot.slane %v2713, 4
        %v2732 = vsel %vm1121, %v2731, %v2730
        %v2733 = vrot.slane %v2714, 3
        %v2734 = vsel %vm1124, %v2733, %v2732
        %v2735 = vrot.slane %v2715, 2
        %v2736 = vsel %vm1127, %v2735, %v2734
        %v2737 = vrot.slane %v2716, 1
        %v2738 = vsel %vm1130, %v2737, %v2736
        %s2740 = scalar_lea.vmem %s135, 48 [#allocation5]
        %2741 = vst [vmem:[%s2740] sm:$0xff] %v2738
        %v2742 = vmul.f32 %v760, %v760
        %v2743 = vmul.f32 %v761, %v761
        %v2744 = vmul.f32 %v762, %v762
        %v2745 = vmul.f32 %v763, %v763
        %v2746 = vmul.f32 %v764, %v764
        %v2747 = vmul.f32 %v765, %v765
        %v2748 = vmul.f32 %v766, %v766
        %v2749 = vmul.f32 %v767, %v767
        %v2750 = vmul.f32 %v768, %v768
        %v2751 = vmul.f32 %v769, %v769
        %v2752 = vmul.f32 %v770, %v770
        %v2753 = vmul.f32 %v771, %v771
        %v2754 = vmul.f32 %v772, %v772
        %v2755 = vmul.f32 %v773, %v773
        %v2756 = vmul.f32 %v774, %v774
        %v2757 = vmul.f32 %v775, %v775
        %v2758 = vadd.f32 %v2742, %v2743
        %v2759 = vadd.f32 %v2758, %v2744
        %v2760 = vadd.f32 %v2759, %v2745
        %v2761 = vadd.f32 %v2760, %v2746
        %v2762 = vadd.f32 %v2761, %v2747
        %v2763 = vadd.f32 %v2762, %v2748
        %v2764 = vadd.f32 %v2763, %v2749
        %v2765 = vadd.f32 %v2764, %v2750
        %v2766 = vadd.f32 %v2765, %v2751
        %v2767 = vadd.f32 %v2766, %v2752
        %v2768 = vadd.f32 %v2767, %v2753
        %v2769 = vadd.f32 %v2768, %v2754
        %v2770 = vadd.f32 %v2769, %v2755
        %v2771 = vadd.f32 %v2770, %v2756
        %v2772 = vadd.f32 %v2771, %v2757
        %v2773 = vrot.slane %v2772, 4
        %v2774 = vadd.f32 %v2772, %v2773
        %v2775 = vrot.slane %v2774, 2
        %v2776 = vadd.f32 %v2774, %v2775
        %v2777 = vrot.slane %v2776, 1
        %v2778 = vadd.f32 %v2776, %v2777
        %v2779 = vmax.f32 %v1071, %v2271
        %v2780 = vmax.f32 %v1431, %v2477
        %v2781 = vmax.f32 %v1748, %v2646
        %v2782 = vmax.f32 %v2028, %v2778
        %v2783 = vmax.f32 %v2779, %v2780
        %v2784 = vmax.f32 %v2781, %v2782
        %v2785 = vmax.f32 %v2783, %v2784
        %v2786 = vsub.f32 %v1071, %v2785
        %v2787 = vsub.f32 %v1431, %v2785
        %v2788 = vsub.f32 %v1748, %v2785
        %v2789 = vsub.f32 %v2028, %v2785
        %v2790 = vsub.f32 %v2271, %v2785
        %v2791 = vsub.f32 %v2477, %v2785
        %v2792 = vsub.f32 %v2646, %v2785
        %v2793 = vsub.f32 %v2778, %v2785
        %v2794 = vmul.f32 %v2786, 1.442695
        %v2795 = vpow.pop %v2794
        %v2796 = vmul.f32 %v2787, 1.442695
        %v2797 = vpow.pop %v2796
        %v2798 = vmul.f32 %v2788, 1.442695
        %v2799 = vpow.pop %v2798
        %v2800 = vmul.f32 %v2789, 1.442695
        %v2801 = vpow.pop %v2800
        %v2802 = vmul.f32 %v2790, 1.442695
        %v2803 = vpow.pop %v2802
        %v2804 = vmul.f32 %v2791, 1.442695
        %v2805 = vpow.pop %v2804
        %v2806 = vmul.f32 %v2792, 1.442695
        %v2807 = vpow.pop %v2806
        %v2808 = vmul.f32 %v2793, 1.442695
        %v2809 = vpow.pop %v2808
        %v2818 = vrot.slane %v2797, 7
        %v2819 = vsel %vm1112, %v2818, %v2795
        %v2820 = vrot.slane %v2799, 6
        %v2821 = vsel %vm1115, %v2820, %v2819
        %v2822 = vrot.slane %v2801, 5
        %v2823 = vsel %vm1118, %v2822, %v2821
        %v2824 = vrot.slane %v2803, 4
        %v2825 = vsel %vm1121, %v2824, %v2823
        %v2826 = vrot.slane %v2805, 3
        %v2827 = vsel %vm1124, %v2826, %v2825
        %v2828 = vrot.slane %v2807, 2
        %v2829 = vsel %vm1127, %v2828, %v2827
        %v2830 = vrot.slane %v2809, 1
        %v2831 = vsel %vm1130, %v2830, %v2829
        %v2833 = vrot.slane %v2831, 4
        %v2834 = vadd.f32 %v2831, %v2833
        %v2835 = vrot.slane %v2834, 2
        %v2836 = vadd.f32 %v2834, %v2835
        %v2837 = vrot.slane %v2836, 1
        %v2838 = vadd.f32 %v2836, %v2837
        %v2839 = vrcp.pop %v2838
        %v2840 = vperm.slane %v2839, 0
        %v2841 = vmul.f32 %v2795, %v2840
        %v2842 = vmul.f32 %v2797, %v2840
        %v2843 = vmul.f32 %v2799, %v2840
        %v2844 = vmul.f32 %v2801, %v2840
        %v2845 = vmul.f32 %v2803, %v2840
        %v2846 = vmul.f32 %v2805, %v2840
        %v2847 = vmul.f32 %v2807, %v2840
        %v2848 = vmul.f32 %v2809, %v2840
        %v2857 = vrot.slane %v2842, 7
        %v2858 = vsel %vm1112, %v2857, %v2841
        %v2859 = vrot.slane %v2843, 6
        %v2860 = vsel %vm1115, %v2859, %v2858
        %v2861 = vrot.slane %v2844, 5
        %v2862 = vsel %vm1118, %v2861, %v2860
        %v2863 = vrot.slane %v2845, 4
        %v2864 = vsel %vm1121, %v2863, %v2862
        %v2865 = vrot.slane %v2846, 3
        %v2866 = vsel %vm1124, %v2865, %v2864
        %v2867 = vrot.slane %v2847, 2
        %v2868 = vsel %vm1127, %v2867, %v2866
        %v2869 = vrot.slane %v2848, 1
        %v2870 = vsel %vm1130, %v2869, %v2868
        %s2872 = scalar_lea.vmem %s135, 56 [#allocation5]
        %2873 = vst [vmem:[%s2872] sm:$0xff] %v2870
        %s2874 = sand.u32 %s52, 1
        %s2875 = scalar_lea.sflag [#allocation4], %s2874
        %s2876 = sand.u32 %s52, 1
        %s2877 = smul.addr %s2876, 64
        %s2878 = scalar_lea.vmem [#allocation5], %s2877
        // Predicated region
        $region29: #{spatial_attention_layer.1} parent=23 // pred_check
          %p2879 = pneg %p62
        $region30: #{spatial_attention_layer.1} parent=23 // pred_check_branch
          %2881 = sbr.rel (%p2879) target = $region32
        $region31: #{spatial_attention_layer.1} parent=23 // pred_region
          %2883 = vsyncadd %s2875, 0
          %s2884 = smul.addr %s18, 8
          %s2885 = scalar_lea.hbm %s1, %s2884
          %s2886 = sshll.u32 %s2878, 4
          %s2887 = int_to_ptr.vmem [resolvable:$true] %s2886
          %s2888 = sshll.u32 %s2885, 4
          %s2889 = int_to_ptr.hbm [resolvable:$true] %s2888
          %2894 = dma.vmem_to_hbm [thread:$0]  %s2887, 1024, %s2889, %s2875, 128, 256, 8
        $region32: #{spatial_attention_layer.1} parent=23 // pred_fallthru
          _
      $region24: #{spatial_attention_layer.1} parent=5 // pred_fallthru
        _
      %p2895 = scmp.le.s32.totalorder 2, %s13
      // Predicated region
      $region33: #{spatial_attention_layer.1} parent=5 // pred_check
        %p2896 = pneg %p2895
      $region34: #{spatial_attention_layer.1} parent=5 // pred_check_branch
        %2898 = sbr.rel (%p2896) target = $region36
      $region35: #{spatial_attention_layer.1} parent=5 // pred_region
        %s2899 = ssub.s32 %s13, 2
        // Predicated region
        $region37: #{spatial_attention_layer.1} parent=35 // pred_check
          %p2900 = pneg %p68
        $region38: #{spatial_attention_layer.1} parent=35 // pred_check_branch
          %2902 = sbr.rel (%p2900) target = $region40
        $region39: #{spatial_attention_layer.1} parent=35 // pred_region
          %s2903 = sand.u32 %s53, 1
          %s2904 = scalar_lea.sflag [#allocation4], %s2903
          %s2905 = sand.u32 %s53, 1
          %s2906 = smul.addr %s2905, 64
          %s2907 = scalar_lea.vmem [#allocation5], %s2906
          %2909 = dma.done %s2904, 1024
        $region40: #{spatial_attention_layer.1} parent=35 // pred_fallthru
          _
      $region36: #{spatial_attention_layer.1} parent=5 // pred_fallthru
        _
    $region6: #{spatial_attention_layer.1} parent=1 // loop_footer
      %s17 = sadd.s32 1, %s13
    $region7: #{spatial_attention_layer.1} parent=1 // loop_footer_branch
      %12 = sbr.rel target = $region3
    $region8: #{spatial_attention_layer.1} parent=1 // loop_exit
      _
    %2910 = vsyncpa [#allocation3], 1
    %s2911 = scalar_lea.sflag [#allocation3], 1
    %2912 = vsyncpa %s2911, 1
    %2913 = vsyncpa [#allocation4], 1
    %s2914 = scalar_lea.sflag [#allocation4], 1
    %2915 = vsyncpa %s2914, 1

</llo_original>
